<compile_context>
chip_gen: v7x
topology: tpu7x:2x2x1
jax: 0.10.0
libtpu: 0.0.40
codegen_flags: <defaults>
</compile_context>

<pallas_src>
import math

import jax
import jax.numpy as jnp
from jax import lax
from jax.experimental import pallas as pl
from jax.experimental.pallas import tpu as pltpu

_SQRT10 = math.sqrt(10.0)


def _pick_tj(hw):
    """Largest 128-multiple tile (<=512) that divides HW, else a single tile."""
    for tj in (512, 384, 256, 128):
        if hw % tj == 0:
            return tj
    return hw


# ----------------------------------------------------------------------------
# Kernel 1: per-batch hot path.
#   x (C, HW)  ->  xa = [x ; ones] built in VMEM scratch
#   phi = Wphi_aug @ xa (bias folded), columns pre-normalized * sqrt(10) so
#   phi_n^T phi_n == 10*cosine  (logits bounded in [-10, 10] => exp is safe
#   without softmax max-subtraction; if the x10 scale or the normalization
#   ever changes, the max must come back).
#   j-tiled:  agg += xa[:, j] @ exp(phi_n^T phi_n[:, j])^T
#   rows 0..C-1 of agg = unnormalized output, row C = softmax denominator.
#   Then the cluster head (C->16->1) and per-batch BN statistics.
# ----------------------------------------------------------------------------
def _make_main_kernel(tj):
    def kernel(x_ref, wphia_ref, w0a_ref, w1_ref, b1_ref,
               out_ref, clu_ref, stats_ref, xa_ref, phin_ref):
        C = x_ref.shape[1]
        HW = x_ref.shape[2]

        # Augmented [x ; ones] in VMEM (no host-side HBM copy of x). The ones
        # row carries the folded conv biases and, through the aggregation
        # matmul, produces the softmax denominators for free.
        xa_ref[:C, :] = x_ref[0]
        xa_ref[C:C + 1, :] = jnp.ones((1, HW), jnp.float32)

        # phi 1x1 conv (bias folded via the ones row).
        phi = jnp.dot(wphia_ref[...], xa_ref[...],
                      preferred_element_type=jnp.float32)            # (Ci, HW)

        # Column pre-normalization (fold sqrt(10)) so phi_n^T phi_n == 10*cos.
        # eps=1e-24 inside rsqrt vs. the reference's 1e-12 clamp on the norm
        # product: both degenerate to a uniform softmax for zero columns.
        inv_norm = lax.rsqrt(jnp.sum(phi * phi, axis=0, keepdims=True) + 1e-24)
        phin_ref[...] = phi * (inv_norm * _SQRT10)
        phin = phin_ref[...]

        nt = HW // tj

        def body(t, agg):
            j0 = pl.multiple_of(t * tj, tj)
            phi_j = phin_ref[:, pl.ds(j0, tj)]                       # (Ci, tj)
            xa_j = xa_ref[:, pl.ds(j0, tj)]                          # (C+1, tj)
            # Logits bounded in [-10, 10] -> exp cannot overflow in f32.
            logits = lax.dot_general(
                phin, phi_j, (((0,), (0,)), ((), ())),
                preferred_element_type=jnp.float32)                  # (HW, tj)
            pw_exp = jnp.exp(logits)      # unnormalized softmax weights
            # rows 0..C-1: unnormalized aggregation; row C: exp-sums.
            return agg + lax.dot_general(
                xa_j, pw_exp, (((1,), (1,)), ((), ())),
                preferred_element_type=jnp.float32)                  # (C+1, HW)

        agg = lax.fori_loop(0, nt, body, jnp.zeros((C + 1, HW), jnp.float32))

        s = agg[C:C + 1, :]                           # (1, HW) denominators
        inv = pl.reciprocal(s, approx=True)           # EUP reciprocal
        inv = inv * (2.0 - s * inv)                   # 1 Newton step -> f32
        outa = agg * inv                              # row C becomes ~1
        out_ref[0] = outa[:C, :]

        # cluster head: ConvModule(C,16,1)+ReLU -> ConvModule(16,1,1).
        # b0 rides on the trailing (==1) row of outa; b1 is an SMEM scalar.
        h0 = jnp.maximum(
            jnp.dot(w0a_ref[...], outa, preferred_element_type=jnp.float32),
            0.0)
        clu = (jnp.dot(w1_ref[...], h0, preferred_element_type=jnp.float32)
               + b1_ref[0])                                          # (1, HW)
        clu_ref[0] = clu

        # Per-batch BN partial statistics so XLA never re-reads the full clu
        # tensor from HBM between the two pallas_calls.
        stats_ref[0, :, 0:1] = jnp.sum(clu, axis=1, keepdims=True)
        stats_ref[0, :, 1:2] = jnp.sum(clu * clu, axis=1, keepdims=True)

    return kernel


# ----------------------------------------------------------------------------
# Kernel 2: per-batch, gridded + pipelined — BatchNorm affine (precomputed
# scale/shift in SMEM), attention map, and the final multiply written in place
# of `out` (input_output_aliases).
# ----------------------------------------------------------------------------
def apply_attention_kernel(bn_ref, out_ref, clu_ref, final_ref, att_ref):
    scale = bn_ref[0]
    shift = bn_ref[1]
    att = jnp.maximum(jnp.tanh(clu_ref[...] * scale + shift) + 0.5, 0.0) * 2.0
    att_ref[...] = att                                  # (1, 1, HW)
    final_ref[...] = out_ref[...] * att                 # broadcast over C


@jax.jit
def nonlocal2d_forward(x, params, eps=1e-5):
    n, C, h, w = x.shape
    HW = h * w
    Ci = params["wphi"].shape[0]
    xf = x.reshape(n, C, HW).astype(jnp.float32)

    # Tiny augmented weights (biases folded onto the in-kernel ones row); x
    # itself is passed as-is.
    wphia = jnp.concatenate(
        [params["wphi"], params["bphi"].reshape(Ci, 1)], axis=1)     # (Ci, C+1)
    w0a = jnp.concatenate(
        [params["w0"], params["b0"].reshape(16, 1)], axis=1)         # (16, C+1)
    w1 = params["w1"]
    b1 = params["b1"].reshape(1).astype(jnp.float32)                 # (1,) SMEM

    tj = _pick_tj(HW)
    main_kernel = _make_main_kernel(tj)

    out_flat, clu_flat, stats = pl.pallas_call(
        main_kernel,
        out_shape=(jax.ShapeDtypeStruct((n, C, HW), jnp.float32),
                   jax.ShapeDtypeStruct((n, 1, HW), jnp.float32),
                   jax.ShapeDtypeStruct((n, 1, 2), jnp.float32)),
        grid_spec=pltpu.PrefetchScalarGridSpec(
            num_scalar_prefetch=0,
            grid=(n,),
            in_specs=[
                pl.BlockSpec((1, C, HW), lambda b: (b, 0, 0)),
                pl.BlockSpec((Ci, C + 1), lambda b: (0, 0)),
                pl.BlockSpec((16, C + 1), lambda b: (0, 0)),
                pl.BlockSpec((1, 16), lambda b: (0, 0)),
                pl.BlockSpec(memory_space=pltpu.MemorySpace.SMEM),
            ],
            out_specs=[
                pl.BlockSpec((1, C, HW), lambda b: (b, 0, 0)),
                pl.BlockSpec((1, 1, HW), lambda b: (b, 0, 0)),
                pl.BlockSpec((1, 1, 2), lambda b: (b, 0, 0)),
            ],
            scratch_shapes=[
                pltpu.VMEM((C + 1, HW), jnp.float32),   # [x ; ones]
                pltpu.VMEM((Ci, HW), jnp.float32),      # normalized phi
            ]),
        compiler_params=pltpu.CompilerParams(
            dimension_semantics=("parallel",),
            # j-tiling bounds the working set to O(HW*tj); 32 MiB is safe on
            # v5e/v6e (128 MiB phys) and v7x (64 MiB phys).
            vmem_limit_bytes=32 * 1024 * 1024),
    )(xf, wphia, w0a, w1, b1)

    # BatchNorm2d(1), training-mode (batch) statistics from the tiny per-batch
    # partial sums (biased variance, matches torch BN). Pure scalar XLA glue.
    cnt = jnp.float32(n * HW)
    sums = jnp.sum(stats, axis=0).reshape(2)          # [sum(clu), sum(clu^2)]
    mean = sums[0] / cnt
    var = jnp.maximum(sums[1] / cnt - mean * mean, 0.0)
    invstd = lax.rsqrt(var + eps)
    scale = params["bn_gamma"] * invstd
    shift = params["bn_beta"] - mean * scale
    bn = jnp.stack([scale, shift]).astype(jnp.float32)               # (2,) SMEM

    final_flat, att_flat = pl.pallas_call(
        apply_attention_kernel,
        out_shape=(jax.ShapeDtypeStruct((n, C, HW), jnp.float32),
                   jax.ShapeDtypeStruct((n, 1, HW), jnp.float32)),
        grid_spec=pltpu.PrefetchScalarGridSpec(
            num_scalar_prefetch=0,
            grid=(n,),
            in_specs=[
                pl.BlockSpec(memory_space=pltpu.MemorySpace.SMEM),
                pl.BlockSpec((1, C, HW), lambda b: (b, 0, 0)),
                pl.BlockSpec((1, 1, HW), lambda b: (b, 0, 0)),
            ],
            out_specs=[
                pl.BlockSpec((1, C, HW), lambda b: (b, 0, 0)),
                pl.BlockSpec((1, 1, HW), lambda b: (b, 0, 0)),
            ]),
        compiler_params=pltpu.CompilerParams(
            dimension_semantics=("parallel",)),
        input_output_aliases={1: 0},              # write final in place of out
    )(bn, out_flat, clu_flat)

    return final_flat.reshape(n, C, h, w), att_flat.reshape(n, 1, h, w)


# ----------------------------------------------------------------------------
# Pure-JAX reference (mirrors the PyTorch forward exactly) for verification.
# ----------------------------------------------------------------------------
def reference_forward(x, p, eps=1e-5):
    n, C, h, w = x.shape
    HW = h * w
    xf = x.reshape(n, C, HW).astype(jnp.float32)
    phi = jnp.einsum("oc,nch->noh", p["wphi"], xf) + p["bphi"].reshape(1, -1, 1)
    theta = jnp.swapaxes(phi, 1, 2)                              # (n, HW, Ci)
    pw = jnp.einsum("nic,ncj->nij", theta, phi) * 10.0
    tn = jnp.sqrt(jnp.sum(theta ** 2, axis=2))                   # (n, HW)
    pn = jnp.sqrt(jnp.sum(phi ** 2, axis=1))                     # (n, HW)
    denom = jnp.maximum(tn[:, :, None] * pn[:, None, :], 1e-12)
    pw = jax.nn.softmax(pw / denom, axis=-1)
    gx = jnp.swapaxes(xf, 1, 2)                                  # (n, HW, C)
    y = jnp.einsum("nij,njc->nic", pw, gx)
    out = jnp.swapaxes(y, 1, 2)                                  # (n, C, HW)
    h0 = jax.nn.relu(jnp.einsum("oc,nch->noh", p["w0"], out)
                     + p["b0"].reshape(1, -1, 1))
    clu = jnp.einsum("oc,nch->noh", p["w1"], h0) + p["b1"].reshape(1, -1, 1)
    mean = jnp.mean(clu)
    var = jnp.var(clu)
    bnv = (clu - mean) / jnp.sqrt(var + eps) * p["bn_gamma"] + p["bn_beta"]
    att = jax.nn.relu(jnp.tanh(bnv) + 0.5) * 2.0
    final = out * att
    return final.reshape(n, C, h, w), att.reshape(n, 1, h, w)


if __name__ == "__main__":
    key = jax.random.PRNGKey(0)
    N, C, H, W = 2, 4, 16, 16          # in_channels=4, in_size=(16, 16)
    reduction = 2
    Ci = C // reduction                # inter_channels = 2
    ks = jax.random.split(key, 8)

    x = jax.random.normal(ks[0], (N, C, H, W), jnp.float32)

    # Deterministic synthetic parameters (shapes from __init__). The PyTorch
    # init zeroes cluster_out[1]; small nonzero values are used here so the
    # attention branch is actually exercised.
    params = {
        "wphi": 0.01 * jax.random.normal(ks[1], (Ci, C), jnp.float32),
        "bphi": 0.01 * jax.random.normal(ks[2], (Ci, 1), jnp.float32),
        "w0":   0.01 * jax.random.normal(ks[3], (16, C), jnp.float32),
        "b0":   0.01 * jax.random.normal(ks[4], (16, 1), jnp.float32),
        "w1":   0.01 * jax.random.normal(ks[5], (1, 16), jnp.float32),
        "b1":   0.01 * jax.random.normal(ks[6], (1, 1), jnp.float32),
        "bn_gamma": jnp.float32(1.0),   # BatchNorm2d(1) affine defaults
        "bn_beta":  jnp.float32(0.0),
    }

    out, att = nonlocal2d_forward(x, params)
    jax.block_until_ready((out, att))

    ref_out, ref_att = reference_forward(x, params)
    assert out.shape == (N, C, H, W) and att.shape == (N, 1, H, W)
    # Tolerances: BatchNorm divides the tiny cluster logits by their batch std
    # (~4e-4 here), amplifying f32 summation-order noise (deferred softmax
    # normalization, folded biases, sum-of-squares variance) by ~2.5e3 through
    # the tanh/ReLU branch; pre-BN features agree to ~1e-5.  A real bug (wrong
    # indexing / formula) produces errors >= 1e-2, far above this tolerance.
    assert jnp.allclose(out, ref_out, rtol=5e-4, atol=5e-4), "output mismatch"
    assert jnp.allclose(att, ref_att, rtol=5e-4, atol=5e-4), "attention mismatch"

    print("KERNEL_OK")
</pallas_src>

<mosaic_0001>
module attributes {stable_mosaic.version = 11 : i64} {
  func.func @apply_attention_kernel(%arg0: i32, %arg1: memref<2xf32, #tpu.memory_space<smem>>, %arg2: memref<1x4x256xf32, #tpu.memory_space<vmem>>, %arg3: memref<1x1x256xf32, #tpu.memory_space<vmem>>, %arg4: memref<1x4x256xf32, #tpu.memory_space<vmem>>, %arg5: memref<1x1x256xf32, #tpu.memory_space<vmem>>) attributes {dimension_semantics = [#tpu.dimension_semantics<parallel>], iteration_bounds = array<i64: 2>, scalar_prefetch = 0 : i64, scratch_operands = 0 : i64, tpu.core_type = #tpu.core_type<tc>, window_params = [{transform_indices = @transform_0, window_bounds = array<i64: 2>}, {transform_indices = @transform_1, window_bounds = array<i64: 1, 4, 256>}, {transform_indices = @transform_2, window_bounds = array<i64: 1, 1, 256>}, {transform_indices = @transform_3, window_bounds = array<i64: 1, 4, 256>}, {transform_indices = @transform_4, window_bounds = array<i64: 1, 1, 256>}]} {
    %c0 = arith.constant 0 : index
    %0 = memref.load %arg1[%c0] : memref<2xf32, #tpu.memory_space<smem>>
    %c1 = arith.constant 1 : index
    %1 = memref.load %arg1[%c1] : memref<2xf32, #tpu.memory_space<smem>>
    %c0_0 = arith.constant 0 : index
    %c0_1 = arith.constant 0 : index
    %c0_2 = arith.constant 0 : index
    %2 = vector.load %arg3[%c0_0, %c0_1, %c0_2] : memref<1x1x256xf32, #tpu.memory_space<vmem>>, vector<1x1x256xf32>
    %3 = vector.broadcast %0 : f32 to vector<1x1x256xf32>
    %4 = arith.mulf %2, %3 : vector<1x1x256xf32>
    %5 = vector.broadcast %1 : f32 to vector<1x1x256xf32>
    %6 = arith.addf %4, %5 : vector<1x1x256xf32>
    %7 = math.tanh %6 : vector<1x1x256xf32>
    %cst = arith.constant 5.000000e-01 : f32
    %8 = vector.broadcast %cst : f32 to vector<1x1x256xf32>
    %9 = arith.addf %7, %8 : vector<1x1x256xf32>
    %cst_3 = arith.constant 0.000000e+00 : f32
    %10 = vector.broadcast %cst_3 : f32 to vector<1x1x256xf32>
    %11 = arith.maximumf %9, %10 : vector<1x1x256xf32>
    %cst_4 = arith.constant 2.000000e+00 : f32
    %12 = vector.broadcast %cst_4 : f32 to vector<1x1x256xf32>
    %13 = arith.mulf %11, %12 : vector<1x1x256xf32>
    %c0_5 = arith.constant 0 : index
    %c0_6 = arith.constant 0 : index
    %c0_7 = arith.constant 0 : index
    %14 = vector.load %arg5[%c0_5, %c0_6, %c0_7] : memref<1x1x256xf32, #tpu.memory_space<vmem>>, vector<1x1x256xf32>
    tpu.vector_store %arg5[%c0_5, %c0_6, %c0_7], %13 {strides = array<i32>} : memref<1x1x256xf32, #tpu.memory_space<vmem>>, vector<1x1x256xf32>,
    %c0_8 = arith.constant 0 : index
    %c0_9 = arith.constant 0 : index
    %c0_10 = arith.constant 0 : index
    %15 = vector.load %arg2[%c0_8, %c0_9, %c0_10] : memref<1x4x256xf32, #tpu.memory_space<vmem>>, vector<1x4x256xf32>
    %16 = vector.broadcast %13 : vector<1x1x256xf32> to vector<1x4x256xf32>
    %17 = arith.mulf %15, %16 : vector<1x4x256xf32>
    %c0_11 = arith.constant 0 : index
    %c0_12 = arith.constant 0 : index
    %c0_13 = arith.constant 0 : index
    %18 = vector.load %arg4[%c0_11, %c0_12, %c0_13] : memref<1x4x256xf32, #tpu.memory_space<vmem>>, vector<1x4x256xf32>
    tpu.vector_store %arg4[%c0_11, %c0_12, %c0_13], %17 {strides = array<i32>} : memref<1x4x256xf32, #tpu.memory_space<vmem>>, vector<1x4x256xf32>,
    return
  }
  func.func @transform_0(%arg0: i32) -> i32 {
    %c0_i32 = arith.constant 0 : i32
    %c0_i32_0 = arith.constant 0 : i32
    return %c0_i32 : i32
  }
  func.func @transform_1(%arg0: i32) -> (i32, i32, i32) {
    %c0_i32 = arith.constant 0 : i32
    %c0_i32_0 = arith.constant 0 : i32
    %c0_i32_1 = arith.constant 0 : i32
    return %arg0, %c0_i32, %c0_i32_0 : i32, i32, i32
  }
  func.func @transform_2(%arg0: i32) -> (i32, i32, i32) {
    %c0_i32 = arith.constant 0 : i32
    %c0_i32_0 = arith.constant 0 : i32
    %c0_i32_1 = arith.constant 0 : i32
    return %arg0, %c0_i32, %c0_i32_0 : i32, i32, i32
  }
  func.func @transform_3(%arg0: i32) -> (i32, i32, i32) {
    %c0_i32 = arith.constant 0 : i32
    %c0_i32_0 = arith.constant 0 : i32
    %c0_i32_1 = arith.constant 0 : i32
    return %arg0, %c0_i32, %c0_i32_0 : i32, i32, i32
  }
  func.func @transform_4(%arg0: i32) -> (i32, i32, i32) {
    %c0_i32 = arith.constant 0 : i32
    %c0_i32_0 = arith.constant 0 : i32
    %c0_i32_1 = arith.constant 0 : i32
    return %arg0, %c0_i32, %c0_i32_0 : i32, i32, i32
  }
}

module attributes {stable_mosaic.version = 11 : i64} {
  func.func @kernel(%arg0: i32, %arg1: memref<1x4x256xf32, #tpu.memory_space<vmem>>, %arg2: memref<2x5xf32, #tpu.memory_space<vmem>>, %arg3: memref<16x5xf32, #tpu.memory_space<vmem>>, %arg4: memref<1x16xf32, #tpu.memory_space<vmem>>, %arg5: memref<1xf32, #tpu.memory_space<smem>>, %arg6: memref<1x4x256xf32, #tpu.memory_space<vmem>>, %arg7: memref<1x1x256xf32, #tpu.memory_space<vmem>>, %arg8: memref<1x1x2xf32, #tpu.memory_space<vmem>>, %arg9: memref<5x256xf32, #tpu.memory_space<vmem>>, %arg10: memref<2x256xf32, #tpu.memory_space<vmem>>) attributes {dimension_semantics = [#tpu.dimension_semantics<parallel>], iteration_bounds = array<i64: 2>, scalar_prefetch = 0 : i64, scratch_operands = 2 : i64, tpu.core_type = #tpu.core_type<tc>, window_params = [{transform_indices = @transform_0, window_bounds = array<i64: 1, 4, 256>}, {pipeline_mode = #tpu.pipeline_mode<synchronous>, transform_indices = @transform_1, window_bounds = array<i64: 2, 5>}, {pipeline_mode = #tpu.pipeline_mode<synchronous>, transform_indices = @transform_2, window_bounds = array<i64: 16, 5>}, {pipeline_mode = #tpu.pipeline_mode<synchronous>, transform_indices = @transform_3, window_bounds = array<i64: 1, 16>}, {transform_indices = @transform_4, window_bounds = array<i64: 1>}, {transform_indices = @transform_5, window_bounds = array<i64: 1, 4, 256>}, {transform_indices = @transform_6, window_bounds = array<i64: 1, 1, 256>}, {transform_indices = @transform_7, window_bounds = array<i64: 1, 1, 2>}]} {
    %c0 = arith.constant 0 : index
    %c0_0 = arith.constant 0 : index
    %c0_1 = arith.constant 0 : index
    %0 = vector.load %arg1[%c0, %c0_0, %c0_1] : memref<1x4x256xf32, #tpu.memory_space<vmem>>, vector<1x4x256xf32>
    %1 = vector.shape_cast %0 : vector<1x4x256xf32> to vector<4x256xf32>
    %c0_2 = arith.constant 0 : index
    %c0_3 = arith.constant 0 : index
    %2 = vector.load %arg9[%c0_2, %c0_3] : memref<5x256xf32, #tpu.memory_space<vmem>>, vector<4x256xf32>
    tpu.vector_store %arg9[%c0_2, %c0_3], %1 {strides = array<i32>} : memref<5x256xf32, #tpu.memory_space<vmem>>, vector<4x256xf32>,
    %cst = arith.constant 1.000000e+00 : f32
    %3 = vector.broadcast %cst : f32 to vector<1x256xf32>
    %c4 = arith.constant 4 : index
    %c0_4 = arith.constant 0 : index
    %4 = vector.load %arg9[%c4, %c0_4] : memref<5x256xf32, #tpu.memory_space<vmem>>, vector<1x256xf32>
    tpu.vector_store %arg9[%c4, %c0_4], %3 {strides = array<i32>} : memref<5x256xf32, #tpu.memory_space<vmem>>, vector<1x256xf32>,
    %c0_5 = arith.constant 0 : index
    %c0_6 = arith.constant 0 : index
    %5 = vector.load %arg2[%c0_5, %c0_6] : memref<2x5xf32, #tpu.memory_space<vmem>>, vector<2x5xf32>
    %c0_7 = arith.constant 0 : index
    %c0_8 = arith.constant 0 : index
    %6 = vector.load %arg9[%c0_7, %c0_8] : memref<5x256xf32, #tpu.memory_space<vmem>>, vector<5x256xf32>
    %cst_9 = arith.constant dense<0.000000e+00> : vector<2x256xf32>
    %7 = tpu.matmul %5, %6, %cst_9 {dimension_numbers = #tpu.dot_dimension_numbers<[1], [0], [0], [1], [0, 0, 1, 1], [], []>} : vector<2x5xf32>, vector<5x256xf32>, vector<2x256xf32> -> vector<2x256xf32>
    %8 = arith.mulf %7, %7 : vector<2x256xf32>
    %cst_10 = arith.constant dense<0.000000e+00> : vector<256xf32>
    %9 = vector.multi_reduction <add>, %8, %cst_10 [0] : vector<2x256xf32> to vector<256xf32>
    %10 = vector.shape_cast %9 : vector<256xf32> to vector<1x256xf32>
    %cst_11 = arith.constant 1.000000e-24 : f32
    %11 = vector.broadcast %cst_11 : f32 to vector<1x256xf32>
    %12 = arith.addf %10, %11 : vector<1x256xf32>
    %13 = math.rsqrt %12 : vector<1x256xf32>
    %cst_12 = arith.constant 3.1622777 : f32
    %14 = vector.broadcast %cst_12 : f32 to vector<1x256xf32>
    %15 = arith.mulf %13, %14 : vector<1x256xf32>
    %16 = vector.broadcast %15 : vector<1x256xf32> to vector<2x256xf32>
    %17 = arith.mulf %7, %16 : vector<2x256xf32>
    %c0_13 = arith.constant 0 : index
    %c0_14 = arith.constant 0 : index
    %18 = vector.load %arg10[%c0_13, %c0_14] : memref<2x256xf32, #tpu.memory_space<vmem>>, vector<2x256xf32>
    tpu.vector_store %arg10[%c0_13, %c0_14], %17 {strides = array<i32>} : memref<2x256xf32, #tpu.memory_space<vmem>>, vector<2x256xf32>,
    %c0_15 = arith.constant 0 : index
    %c0_16 = arith.constant 0 : index
    %19 = vector.load %arg10[%c0_15, %c0_16] : memref<2x256xf32, #tpu.memory_space<vmem>>, vector<2x256xf32>
    %cst_17 = arith.constant 0.000000e+00 : f32
    %20 = vector.broadcast %cst_17 : f32 to vector<5x256xf32>
    %c0_i32 = arith.constant 0 : i32
    %c256_i32 = arith.constant 256 : i32
    %21 = arith.muli %c0_i32, %c256_i32 : i32
    %22 = tpu.assume_multiple %21, 256 : i32
    %c0_18 = arith.constant 0 : index
    %23 = arith.index_cast %22 : i32 to index
    %24 = vector.load %arg10[%c0_18, %23] : memref<2x256xf32, #tpu.memory_space<vmem>>, vector<2x256xf32>
    %c0_19 = arith.constant 0 : index
    %25 = arith.index_cast %22 : i32 to index
    %26 = vector.load %arg9[%c0_19, %25] : memref<5x256xf32, #tpu.memory_space<vmem>>, vector<5x256xf32>
    %cst_20 = arith.constant dense<0.000000e+00> : vector<256x256xf32>
    %27 = tpu.matmul %19, %24, %cst_20 {dimension_numbers = #tpu.dot_dimension_numbers<[0], [0], [1], [1], [0, 1, 1, 1], [], []>} : vector<2x256xf32>, vector<2x256xf32>, vector<256x256xf32> -> vector<256x256xf32>
    %28 = math.exp %27 : vector<256x256xf32>
    %cst_21 = arith.constant dense<0.000000e+00> : vector<5x256xf32>
    %29 = tpu.matmul %26, %28, %cst_21 {dimension_numbers = #tpu.dot_dimension_numbers<[1], [1], [0], [0], [0, 0, 1, 0], [], []>} : vector<5x256xf32>, vector<256x256xf32>, vector<5x256xf32> -> vector<5x256xf32>
    %30 = arith.addf %20, %29 : vector<5x256xf32>
    %c1_i32 = arith.constant 1 : i32
    %31 = vector.extract_strided_slice %30 {offsets = [4, 0], sizes = [1, 256], strides = [1, 1]} : vector<5x256xf32> to vector<1x256xf32>
    %32 = tpu.reciprocal %31 {approx = true} : vector<1x256xf32> -> vector<1x256xf32>
    %33 = arith.mulf %31, %32 : vector<1x256xf32>
    %cst_22 = arith.constant 2.000000e+00 : f32
    %34 = vector.broadcast %cst_22 : f32 to vector<1x256xf32>
    %35 = arith.subf %34, %33 : vector<1x256xf32>
    %36 = arith.mulf %32, %35 : vector<1x256xf32>
    %37 = vector.broadcast %36 : vector<1x256xf32> to vector<5x256xf32>
    %38 = arith.mulf %30, %37 : vector<5x256xf32>
    %39 = vector.extract_strided_slice %38 {offsets = [0, 0], sizes = [4, 256], strides = [1, 1]} : vector<5x256xf32> to vector<4x256xf32>
    %c0_23 = arith.constant 0 : index
    %c0_24 = arith.constant 0 : index
    %c0_25 = arith.constant 0 : index
    %40 = vector.load %arg6[%c0_23, %c0_24, %c0_25] : memref<1x4x256xf32, #tpu.memory_space<vmem>>, vector<1x4x256xf32>
    %41 = vector.shape_cast %40 : vector<1x4x256xf32> to vector<4x256xf32>
    %42 = vector.shape_cast %39 : vector<4x256xf32> to vector<1x4x256xf32>
    tpu.vector_store %arg6[%c0_23, %c0_24, %c0_25], %42 {strides = array<i32>} : memref<1x4x256xf32, #tpu.memory_space<vmem>>, vector<1x4x256xf32>,
    %c0_26 = arith.constant 0 : index
    %c0_27 = arith.constant 0 : index
    %43 = vector.load %arg3[%c0_26, %c0_27] : memref<16x5xf32, #tpu.memory_space<vmem>>, vector<16x5xf32>
    %cst_28 = arith.constant dense<0.000000e+00> : vector<16x256xf32>
    %44 = tpu.matmul %43, %38, %cst_28 {dimension_numbers = #tpu.dot_dimension_numbers<[1], [0], [0], [1], [0, 0, 1, 1], [], []>} : vector<16x5xf32>, vector<5x256xf32>, vector<16x256xf32> -> vector<16x256xf32>
    %cst_29 = arith.constant 0.000000e+00 : f32
    %45 = vector.broadcast %cst_29 : f32 to vector<16x256xf32>
    %46 = arith.maximumf %44, %45 : vector<16x256xf32>
    %c0_30 = arith.constant 0 : index
    %c0_31 = arith.constant 0 : index
    %47 = vector.load %arg4[%c0_30, %c0_31] : memref<1x16xf32, #tpu.memory_space<vmem>>, vector<1x16xf32>
    %cst_32 = arith.constant dense<0.000000e+00> : vector<1x256xf32>
    %48 = tpu.matmul %47, %46, %cst_32 {dimension_numbers = #tpu.dot_dimension_numbers<[1], [0], [0], [1], [0, 0, 1, 1], [], []>} : vector<1x16xf32>, vector<16x256xf32>, vector<1x256xf32> -> vector<1x256xf32>
    %c0_33 = arith.constant 0 : index
    %49 = memref.load %arg5[%c0_33] : memref<1xf32, #tpu.memory_space<smem>>
    %50 = vector.broadcast %49 : f32 to vector<1x256xf32>
    %51 = arith.addf %48, %50 : vector<1x256xf32>
    %c0_34 = arith.constant 0 : index
    %c0_35 = arith.constant 0 : index
    %c0_36 = arith.constant 0 : index
    %52 = vector.load %arg7[%c0_34, %c0_35, %c0_36] : memref<1x1x256xf32, #tpu.memory_space<vmem>>, vector<1x1x256xf32>
    %53 = vector.shape_cast %52 : vector<1x1x256xf32> to vector<1x256xf32>
    %54 = vector.shape_cast %51 : vector<1x256xf32> to vector<1x1x256xf32>
    tpu.vector_store %arg7[%c0_34, %c0_35, %c0_36], %54 {strides = array<i32>} : memref<1x1x256xf32, #tpu.memory_space<vmem>>, vector<1x1x256xf32>,
    %cst_37 = arith.constant dense<0.000000e+00> : vector<1xf32>
    %55 = vector.multi_reduction <add>, %51, %cst_37 [1] : vector<1x256xf32> to vector<1xf32>
    %56 = vector.shape_cast %55 : vector<1xf32> to vector<1x1xf32>
    %c0_38 = arith.constant 0 : index
    %c0_39 = arith.constant 0 : index
    %c0_40 = arith.constant 0 : index
    %57 = vector.load %arg8[%c0_38, %c0_39, %c0_40] : memref<1x1x2xf32, #tpu.memory_space<vmem>>, vector<1x1x1xf32>
    %58 = vector.shape_cast %57 : vector<1x1x1xf32> to vector<1x1xf32>
    %59 = vector.shape_cast %56 : vector<1x1xf32> to vector<1x1x1xf32>
    tpu.vector_store %arg8[%c0_38, %c0_39, %c0_40], %59 {strides = array<i32>} : memref<1x1x2xf32, #tpu.memory_space<vmem>>, vector<1x1x1xf32>,
    %60 = arith.mulf %51, %51 : vector<1x256xf32>
    %cst_41 = arith.constant dense<0.000000e+00> : vector<1xf32>
    %61 = vector.multi_reduction <add>, %60, %cst_41 [1] : vector<1x256xf32> to vector<1xf32>
    %62 = vector.shape_cast %61 : vector<1xf32> to vector<1x1xf32>
    %c0_42 = arith.constant 0 : index
    %c0_43 = arith.constant 0 : index
    %c1 = arith.constant 1 : index
    %63 = vector.load %arg8[%c0_42, %c0_43, %c1] : memref<1x1x2xf32, #tpu.memory_space<vmem>>, vector<1x1x1xf32>
    %64 = vector.shape_cast %63 : vector<1x1x1xf32> to vector<1x1xf32>
    %65 = vector.shape_cast %62 : vector<1x1xf32> to vector<1x1x1xf32>
    tpu.vector_store %arg8[%c0_42, %c0_43, %c1], %65 {strides = array<i32>} : memref<1x1x2xf32, #tpu.memory_space<vmem>>, vector<1x1x1xf32>,
    return
  }
  func.func @transform_0(%arg0: i32) -> (i32, i32, i32) {
    %c0_i32 = arith.constant 0 : i32
    %c0_i32_0 = arith.constant 0 : i32
    %c0_i32_1 = arith.constant 0 : i32
    return %arg0, %c0_i32, %c0_i32_0 : i32, i32, i32
  }
  func.func @transform_1(%arg0: i32) -> (i32, i32) {
    %c0_i32 = arith.constant 0 : i32
    %c0_i32_0 = arith.constant 0 : i32
    %c0_i32_1 = arith.constant 0 : i32
    return %c0_i32, %c0_i32_0 : i32, i32
  }
  func.func @transform_2(%arg0: i32) -> (i32, i32) {
    %c0_i32 = arith.constant 0 : i32
    %c0_i32_0 = arith.constant 0 : i32
    %c0_i32_1 = arith.constant 0 : i32
    return %c0_i32, %c0_i32_0 : i32, i32
  }
  func.func @transform_3(%arg0: i32) -> (i32, i32) {
    %c0_i32 = arith.constant 0 : i32
    %c0_i32_0 = arith.constant 0 : i32
    %c0_i32_1 = arith.constant 0 : i32
    return %c0_i32, %c0_i32_0 : i32, i32
  }
  func.func @transform_4(%arg0: i32) -> i32 {
    %c0_i32 = arith.constant 0 : i32
    %c0_i32_0 = arith.constant 0 : i32
    return %c0_i32 : i32
  }
  func.func @transform_5(%arg0: i32) -> (i32, i32, i32) {
    %c0_i32 = arith.constant 0 : i32
    %c0_i32_0 = arith.constant 0 : i32
    %c0_i32_1 = arith.constant 0 : i32
    return %arg0, %c0_i32, %c0_i32_0 : i32, i32, i32
  }
  func.func @transform_6(%arg0: i32) -> (i32, i32, i32) {
    %c0_i32 = arith.constant 0 : i32
    %c0_i32_0 = arith.constant 0 : i32
    %c0_i32_1 = arith.constant 0 : i32
    return %arg0, %c0_i32, %c0_i32_0 : i32, i32, i32
  }
  func.func @transform_7(%arg0: i32) -> (i32, i32, i32) {
    %c0_i32 = arith.constant 0 : i32
    %c0_i32_0 = arith.constant 0 : i32
    %c0_i32_1 = arith.constant 0 : i32
    return %arg0, %c0_i32, %c0_i32_0 : i32, i32, i32
  }
}

</mosaic_0001>

<llo_original>
// kernel: nonlocal2d_forward.3
$region0: #{nonlocal2d_forward.3}
  #allocation0 [shape = 'u32[]', space=smem, size = 0x4, offset = 0x4, fixed_abs, tag = 'smem constant byte address 0x4 - core index']
  #allocation1 [shape = 'u32[144,128]{1,0:T(1,128)}', space=vmem, size = 0x12000, scoped, tag = 'internal scratch']
  %s0 = inlined_call_operand.vmem [shape: f32[2], index: 0, kind: input, shape index: {}]
  %s1 = inlined_call_operand.vmem [shape: f32[2,4,256], index: 1, kind: input, shape index: {}, may-alias: {1,3}]
  %s2 = inlined_call_operand.vmem [shape: f32[2,1,256], index: 2, kind: input, shape index: {}]
  %s3 = inlined_call_operand.vmem [shape: f32[2,4,256], index: 3, kind: output, shape index: {0}, may-alias: {1,3}]
  %s4 = inlined_call_operand.vmem [shape: f32[2,1,256], index: 4, kind: output, shape index: {1}]
  %5 = xla_tuple %s3, %s4
  %s6 = sld [smem:[#allocation0]]
  $region57: #{nonlocal2d_forward.3} parent=0
    _
  %s8 = ssub.s32 1, %s6
  %s9 = scalar_select 0, %s8, %s6
  $region1: #{nonlocal2d_forward.3} parent=0
    #allocation2 [shape = 'u8[512]{0}', space=smem, size = 0x200, scoped, tag = 'input window, operand 0, single buffered']
    #allocation3 [shape = 's32[2]{0}', space=sflag, size = 0x8, scoped, tag = 'scoped memory for nonlocal2d_forward.3']
    %10 = vsyncpa [#allocation3], 0
    loop: start=0, step=1, limit=4
    $region2: #{nonlocal2d_forward.3} parent=1 // loop_pre_header
      _
    $region3: #{nonlocal2d_forward.3} parent=1 // loop_header
      %s12 = sphi 0, %s16
      %p13 = scmp.ge.s32.totalorder %s12, 4
      %s20 = sphi 0, %s20
      %s22 = sphi 0, %s20
      %s23 = sphi 0, %s22
      %s37 = sphi 0, %s23
      %s43 = sphi 0, %s45
      %s46 = sphi 0, %s43
      %s47 = sphi 0, %s46
      %s63 = sphi 0, %s47
      %s69 = sphi 0, %s71
      %s72 = sphi 0, %s69
      %s73 = sphi 0, %s72
      %s89 = sphi 0, %s73
      %s95 = sphi 0, %s97
      %s98 = sphi 0, %s95
      %s99 = sphi 0, %s98
      %s115 = sphi 0, %s99
      %s121 = sphi 0, %s123
      %s124 = sphi 0, %s121
      %s125 = sphi 0, %s124
      %s141 = sphi 0, %s125
    $region4: #{nonlocal2d_forward.3} parent=1 // loop_header_branch
      %15 = sbr.rel (%p13) target = $region8
    $region5: #{nonlocal2d_forward.3} parent=1 // loop_body
      %s17 = ssub.s32 %s12, 1
      %s18 = ssub.s32 %s12, 2
      %s19 = sadd.s32 %s12, 1
      %s21 = sadd.s32 %s20, 1
      %p24 = scmp.eq.s32.totalorder %s12, 1
      %p25 = scmp.ne.s32.totalorder %s20, %s22
      %p26 = scmp.eq.s32.totalorder %s12, 0
      %p27 = por %p25, %p26
      %p28 = scmp.ne.s32.totalorder %s20, %s22
      %p29 = scmp.eq.s32.totalorder %s17, 1
      %p30 = por %p28, %p29
      %p31 = scmp.ne.s32.totalorder %s22, %s23
      %p32 = scmp.eq.s32.totalorder %s17, 0
      %p33 = por %p31, %p32
      %p34 = scmp.ne.s32.totalorder %s22, %s23
      %p35 = scmp.eq.s32.totalorder %s18, 1
      %p36 = por %p34, %p35
      %p38 = scmp.ne.s32.totalorder %s23, %s37
      %p39 = scmp.eq.s32.totalorder %s18, 0
      %p40 = por %p38, %p39
      %s41 = ssub.s32 %s12, %s19
      %p42 = scmp.eq.s32.totalorder %s41, 0
      %s44 = sadd.s32 %s43, 1
      %s45 = scalar_select %p42, %s43, %s44
      %p48 = pneg %p42
      %p49 = scmp.eq.s32.totalorder %s12, 1
      %p50 = por %p48, %p49
      %p51 = scmp.ne.s32.totalorder %s43, %s46
      %p52 = scmp.eq.s32.totalorder %s12, 0
      %p53 = por %p51, %p52
      %p54 = scmp.ne.s32.totalorder %s43, %s46
      %p55 = scmp.eq.s32.totalorder %s17, 1
      %p56 = por %p54, %p55
      %p57 = scmp.ne.s32.totalorder %s46, %s47
      %p58 = scmp.eq.s32.totalorder %s17, 0
      %p59 = por %p57, %p58
      %p60 = scmp.ne.s32.totalorder %s46, %s47
      %p61 = scmp.eq.s32.totalorder %s18, 1
      %p62 = por %p60, %p61
      %p64 = scmp.ne.s32.totalorder %s47, %s63
      %p65 = scmp.eq.s32.totalorder %s18, 0
      %p66 = por %p64, %p65
      %s67 = ssub.s32 %s12, %s19
      %p68 = scmp.eq.s32.totalorder %s67, 0
      %s70 = sadd.s32 %s69, 1
      %s71 = scalar_select %p68, %s69, %s70
      %p74 = pneg %p68
      %p75 = scmp.eq.s32.totalorder %s12, 1
      %p76 = por %p74, %p75
      %p77 = scmp.ne.s32.totalorder %s69, %s72
      %p78 = scmp.eq.s32.totalorder %s12, 0
      %p79 = por %p77, %p78
      %p80 = scmp.ne.s32.totalorder %s69, %s72
      %p81 = scmp.eq.s32.totalorder %s17, 1
      %p82 = por %p80, %p81
      %p83 = scmp.ne.s32.totalorder %s72, %s73
      %p84 = scmp.eq.s32.totalorder %s17, 0
      %p85 = por %p83, %p84
      %p86 = scmp.ne.s32.totalorder %s72, %s73
      %p87 = scmp.eq.s32.totalorder %s18, 1
      %p88 = por %p86, %p87
      %p90 = scmp.ne.s32.totalorder %s73, %s89
      %p91 = scmp.eq.s32.totalorder %s18, 0
      %p92 = por %p90, %p91
      %s93 = ssub.s32 %s12, %s19
      %p94 = scmp.eq.s32.totalorder %s93, 0
      %s96 = sadd.s32 %s95, 1
      %s97 = scalar_select %p94, %s95, %s96
      %p100 = pneg %p94
      %p101 = scmp.eq.s32.totalorder %s12, 1
      %p102 = por %p100, %p101
      %p103 = scmp.ne.s32.totalorder %s95, %s98
      %p104 = scmp.eq.s32.totalorder %s12, 0
      %p105 = por %p103, %p104
      %p106 = scmp.ne.s32.totalorder %s95, %s98
      %p107 = scmp.eq.s32.totalorder %s17, 1
      %p108 = por %p106, %p107
      %p109 = scmp.ne.s32.totalorder %s98, %s99
      %p110 = scmp.eq.s32.totalorder %s17, 0
      %p111 = por %p109, %p110
      %p112 = scmp.ne.s32.totalorder %s98, %s99
      %p113 = scmp.eq.s32.totalorder %s18, 1
      %p114 = por %p112, %p113
      %p116 = scmp.ne.s32.totalorder %s99, %s115
      %p117 = scmp.eq.s32.totalorder %s18, 0
      %p118 = por %p116, %p117
      %s119 = ssub.s32 %s12, %s19
      %p120 = scmp.eq.s32.totalorder %s119, 0
      %s122 = sadd.s32 %s121, 1
      %s123 = scalar_select %p120, %s121, %s122
      %p126 = pneg %p120
      %p127 = scmp.eq.s32.totalorder %s12, 1
      %p128 = por %p126, %p127
      %p129 = scmp.ne.s32.totalorder %s121, %s124
      %p130 = scmp.eq.s32.totalorder %s12, 0
      %p131 = por %p129, %p130
      %p132 = scmp.ne.s32.totalorder %s121, %s124
      %p133 = scmp.eq.s32.totalorder %s17, 1
      %p134 = por %p132, %p133
      %p135 = scmp.ne.s32.totalorder %s124, %s125
      %p136 = scmp.eq.s32.totalorder %s17, 0
      %p137 = por %p135, %p136
      %p138 = scmp.ne.s32.totalorder %s124, %s125
      %p139 = scmp.eq.s32.totalorder %s18, 1
      %p140 = por %p138, %p139
      %p142 = scmp.ne.s32.totalorder %s125, %s141
      %p143 = scmp.eq.s32.totalorder %s18, 0
      %p144 = por %p142, %p143
      %p145 = scmp.le.s32.totalorder 1, %s12
      %p146 = scmp.lt.s32.totalorder %s12, 3
      %p147 = pnand %p145, %p146
      %p148 = pneg %p147
      // Predicated region
      $region9: #{nonlocal2d_forward.3} parent=5 // pred_check
        _
      $region10: #{nonlocal2d_forward.3} parent=5 // pred_check_branch
        %150 = sbr.rel (%p147) target = $region12
      $region11: #{nonlocal2d_forward.3} parent=5 // pred_region
        %s151 = ssub.s32 %s12, 1
        // Predicated region
        $region13: #{nonlocal2d_forward.3} parent=11 // pred_check
          %p152 = pneg %p33
        $region14: #{nonlocal2d_forward.3} parent=11 // pred_check_branch
          %154 = sbr.rel (%p152) target = $region16
        $region15: #{nonlocal2d_forward.3} parent=11 // pred_region
          %s156 = ssub.s32 16, 16
          %157 = vsyncadd [#allocation3], %s156
          %s159 = sshll.u32 %s0, 4
          %s160 = int_to_ptr.vmem [resolvable:$true] %s159
          %162 = dma.vmem_to_smem %s160, 16, [#allocation2], [#allocation3]
        $region16: #{nonlocal2d_forward.3} parent=11 // pred_fallthru
          _
      $region12: #{nonlocal2d_forward.3} parent=5 // pred_fallthru
        _
      %p163 = scmp.lt.s32.totalorder %s12, 2
      // Predicated region
      $region17: #{nonlocal2d_forward.3} parent=5 // pred_check
        %p164 = pneg %p163
      $region18: #{nonlocal2d_forward.3} parent=5 // pred_check_branch
        %166 = sbr.rel (%p164) target = $region20
      $region19: #{nonlocal2d_forward.3} parent=5 // pred_region
        // Predicated region
        $region21: #{nonlocal2d_forward.3} parent=19 // pred_check
          %p167 = pneg %p53
        $region22: #{nonlocal2d_forward.3} parent=19 // pred_check_branch
          %169 = sbr.rel (%p167) target = $region24
        $region23: #{nonlocal2d_forward.3} parent=19 // pred_region
          %p170 = scmp.lt.s32.totalorder %s12, 1
          %s171 = scalar_select %p170, %s12, 1
          %s172 = smul.addr %s171, 2
          %s173 = smul.addr %s172, 4
          %s174 = scalar_lea.vmem %s1, %s173
        $region24: #{nonlocal2d_forward.3} parent=19 // pred_fallthru
          _
        // Predicated region
        $region25: #{nonlocal2d_forward.3} parent=19 // pred_check
          %p175 = pneg %p79
        $region26: #{nonlocal2d_forward.3} parent=19 // pred_check_branch
          %177 = sbr.rel (%p175) target = $region28
        $region27: #{nonlocal2d_forward.3} parent=19 // pred_region
          %p178 = scmp.lt.s32.totalorder %s12, 1
          %s179 = scalar_select %p178, %s12, 1
          %s180 = smul.addr %s179, 2
          %s181 = scalar_lea.vmem %s2, %s180
        $region28: #{nonlocal2d_forward.3} parent=19 // pred_fallthru
          _
      $region20: #{nonlocal2d_forward.3} parent=5 // pred_fallthru
        _
      %p182 = scmp.le.s32.totalorder 1, %s12
      %p183 = scmp.lt.s32.totalorder %s12, 3
      %p184 = pnand %p182, %p183
      %p185 = pneg %p184
      // Predicated region
      $region29: #{nonlocal2d_forward.3} parent=5 // pred_check
        _
      $region30: #{nonlocal2d_forward.3} parent=5 // pred_check_branch
        %187 = sbr.rel (%p184) target = $region32
      $region31: #{nonlocal2d_forward.3} parent=5 // pred_region
        %s188 = ssub.s32 %s12, 1
        // Predicated region
        $region33: #{nonlocal2d_forward.3} parent=31 // pred_check
          %p189 = pneg %p33
        $region34: #{nonlocal2d_forward.3} parent=31 // pred_check_branch
          %191 = sbr.rel (%p189) target = $region36
        $region35: #{nonlocal2d_forward.3} parent=31 // pred_region
          %192 = dma.done [#allocation3], 16
        $region36: #{nonlocal2d_forward.3} parent=31 // pred_fallthru
          _
        %193 = sfence
        %p194 = pneg %p33
        %p195 = pneg %p30
        %p196 = scmp.lt.s32.totalorder %s17, 1
        %s197 = scalar_select %p196, %s17, 1
        %s198 = smul.addr %s197, 2
        %s199 = smul.addr %s198, 4
        %s200 = scalar_lea.vmem %s1, %s199
        %p201 = pneg %p59
        %p202 = pneg %p56
        %p203 = scmp.lt.s32.totalorder %s17, 1
        %s204 = scalar_select %p203, %s17, 1
        %s205 = smul.addr %s204, 2
        %s206 = scalar_lea.vmem %s2, %s205
        %p207 = pneg %p85
        %p208 = pneg %p82
        %p209 = pneg %p111
        %p210 = pneg %p108
        %p211 = scmp.lt.s32.totalorder %s17, 1
        %s212 = scalar_select %p211, %s17, 1
        %s213 = smul.addr %s212, 2
        %s214 = smul.addr %s213, 4
        %s215 = scalar_lea.vmem %s3, %s214
        %p216 = pneg %p137
        %p217 = pneg %p134
        %p218 = scmp.lt.s32.totalorder %s17, 1
        %s219 = scalar_select %p218, %s17, 1
        %s220 = smul.addr %s219, 2
        %s221 = scalar_lea.vmem %s4, %s220
        %p222 = scmp.lt.s32.totalorder %s17, 1
        %s223 = scalar_select %p222, %s17, 1
        %s224 = smul.addr %s223, 2
        %s225 = smul.addr %s224, 4
        %s226 = scalar_lea.vmem %s1, %s225
        %p227 = scmp.lt.s32.totalorder %s17, 1
        %s228 = scalar_select %p227, %s17, 1
        %s229 = smul.addr %s228, 2
        %s230 = scalar_lea.vmem %s2, %s229
        %p231 = scmp.lt.s32.totalorder %s17, 1
        %s232 = scalar_select %p231, %s17, 1
        %s233 = smul.addr %s232, 2
        %s234 = smul.addr %s233, 4
        %s235 = scalar_lea.vmem %s3, %s234
        %p236 = scmp.lt.s32.totalorder %s17, 1
        %s237 = scalar_select %p236, %s17, 1
        %s238 = smul.addr %s237, 2
        %s239 = scalar_lea.vmem %s4, %s238
        %s240 = sld [smem:[#allocation2]]
        %s241 = sld [smem:[#allocation2 + $0x1]]
        %v242 = vld [vmem:[%s230] sm:$0x3]
        %v243 = vstv %s240
        %v244 = vmul.f32 %v242, %v243
        %v245 = vstv %s241
        %v246 = vadd.f32 %v244, %v245
        %v247 = vtanh.pop %v246
        %v248 = vadd.f32 %v247, 0.5
        %v249 = vmax.f32 %v248, 0.0
        %v250 = vmul.f32 %v249, 2.0
        %v251 = vlaneseq
        %vm252 = vcmp.ge.s32.totalorder %v251, 0
        %vm253 = vcmp.lt.s32.totalorder %v251, 256
        %vm254 = vmand %vm252, %vm253
        %255 = vst.msk [vmem:[%s239] sm:$0x3] %vm254, %v250
        %v256 = vld [vmem:[%s226] sm:$0xff]
        %v258 = vlaneseq
        %v259 = vshrl.u32 %v258, 7
        %v260 = vsub.s32 0, %v259
        %v261 = vrot.slane %v250, %v260
        %v262 = vlaneseq
        %v263 = vshrl.u32 %v262, 7
        %v264 = vsub.s32 1, %v263
        %v265 = vrot.slane %v250, %v264
        %v266 = vcombine.low %v261, %v265
        %v268 = vmul.f32 %v256, %v266
        %269 = vst [vmem:[%s235] sm:$0xff] %v268
        %p270 = scmp.lt.s32.totalorder %s17, 1
        %s271 = scalar_select %p270, %s17, 1
        %s272 = smul.addr %s271, 2
        %s273 = smul.addr %s272, 4
        %s274 = scalar_lea.vmem %s3, %s273
        %p275 = scmp.lt.s32.totalorder %s17, 1
        %s276 = scalar_select %p275, %s17, 1
        %s277 = smul.addr %s276, 2
        %s278 = scalar_lea.vmem %s4, %s277
        // Predicated region
        $region37: #{nonlocal2d_forward.3} parent=31 // pred_check
          %p279 = pneg %p108
        $region38: #{nonlocal2d_forward.3} parent=31 // pred_check_branch
          %281 = sbr.rel (%p279) target = $region40
        $region39: #{nonlocal2d_forward.3} parent=31 // pred_region
          _
        $region40: #{nonlocal2d_forward.3} parent=31 // pred_fallthru
          _
        // Predicated region
        $region41: #{nonlocal2d_forward.3} parent=31 // pred_check
          %p282 = pneg %p134
        $region42: #{nonlocal2d_forward.3} parent=31 // pred_check_branch
          %284 = sbr.rel (%p282) target = $region44
        $region43: #{nonlocal2d_forward.3} parent=31 // pred_region
          _
        $region44: #{nonlocal2d_forward.3} parent=31 // pred_fallthru
          _
      $region32: #{nonlocal2d_forward.3} parent=5 // pred_fallthru
        _
      %p285 = scmp.le.s32.totalorder 2, %s12
      // Predicated region
      $region45: #{nonlocal2d_forward.3} parent=5 // pred_check
        %p286 = pneg %p285
      $region46: #{nonlocal2d_forward.3} parent=5 // pred_check_branch
        %288 = sbr.rel (%p286) target = $region48
      $region47: #{nonlocal2d_forward.3} parent=5 // pred_region
        %s289 = ssub.s32 %s12, 2
        // Predicated region
        $region49: #{nonlocal2d_forward.3} parent=47 // pred_check
          %p290 = pneg %p114
        $region50: #{nonlocal2d_forward.3} parent=47 // pred_check_branch
          %292 = sbr.rel (%p290) target = $region52
        $region51: #{nonlocal2d_forward.3} parent=47 // pred_region
          %p293 = scmp.lt.s32.totalorder %s18, 1
          %s294 = scalar_select %p293, %s18, 1
          %s295 = smul.addr %s294, 2
          %s296 = smul.addr %s295, 4
          %s297 = scalar_lea.vmem %s3, %s296
        $region52: #{nonlocal2d_forward.3} parent=47 // pred_fallthru
          _
        // Predicated region
        $region53: #{nonlocal2d_forward.3} parent=47 // pred_check
          %p298 = pneg %p140
        $region54: #{nonlocal2d_forward.3} parent=47 // pred_check_branch
          %300 = sbr.rel (%p298) target = $region56
        $region55: #{nonlocal2d_forward.3} parent=47 // pred_region
          %p301 = scmp.lt.s32.totalorder %s18, 1
          %s302 = scalar_select %p301, %s18, 1
          %s303 = smul.addr %s302, 2
          %s304 = scalar_lea.vmem %s4, %s303
        $region56: #{nonlocal2d_forward.3} parent=47 // pred_fallthru
          _
      $region48: #{nonlocal2d_forward.3} parent=5 // pred_fallthru
        _
    $region6: #{nonlocal2d_forward.3} parent=1 // loop_footer
      %s16 = sadd.s32 1, %s12
    $region7: #{nonlocal2d_forward.3} parent=1 // loop_footer_branch
      %11 = sbr.rel target = $region3
    $region8: #{nonlocal2d_forward.3} parent=1 // loop_exit
      _
    %305 = vsyncpa [#allocation3], 1
    %s306 = scalar_lea.sflag [#allocation3], 1
    %307 = vsyncpa %s306, 1

// kernel: nonlocal2d_forward.2
$region0: #{nonlocal2d_forward.2}
  #allocation0 [shape = 'u32[]', space=smem, size = 0x4, offset = 0x4, fixed_abs, tag = 'smem constant byte address 0x4 - core index']
  #allocation1 [shape = 'u32[144,128]{1,0:T(1,128)}', space=vmem, size = 0x12000, scoped, tag = 'internal scratch']
  #allocation2 [shape = 'f32[5,256]{1,0:T(8,128)}', space=vmem, size = 0x2000, scoped, tag = 'scratch operand']
  #allocation3 [shape = 'f32[2,256]{1,0:T(2,128)}', space=vmem, size = 0x800, scoped, tag = 'scratch operand']
  #allocation4 [shape = 'f32[1]{0:T(128)S(6)}', space=smem, size = 0x200, scoped, tag = 'scoped memory for nonlocal2d_forward.2']
  %s0 = inlined_call_operand.vmem [shape: f32[2,4,256], index: 0, kind: input, shape index: {}]
  %s1 = inlined_call_operand.vmem [shape: f32[2,5], index: 1, kind: input, shape index: {}]
  %s2 = inlined_call_operand.vmem [shape: f32[16,5], index: 2, kind: input, shape index: {}]
  %s3 = inlined_call_operand.vmem [shape: f32[1,16], index: 3, kind: input, shape index: {}]
  %s4 = inlined_call_operand.<no memory space> [shape: f32[1], index: 4, kind: input, shape index: {}]
  %s5 = inlined_call_operand.vmem [shape: f32[2,4,256], index: 5, kind: output, shape index: {0}]
  %s6 = inlined_call_operand.vmem [shape: f32[2,1,256], index: 6, kind: output, shape index: {1}]
  %s7 = inlined_call_operand.vmem [shape: f32[2,1,2], index: 7, kind: output, shape index: {2}]
  %8 = xla_tuple %s5, %s6, %s7
  %s9 = sld [smem:[#allocation0]]
  $region69: #{nonlocal2d_forward.2} parent=0
    _
  %s11 = ssub.s32 1, %s9
  %s12 = scalar_select 0, %s11, %s9
  %13 = sst [smem:[#allocation4]] %s4
  loop: start=0, step=1, limit=4
  $region2: #{nonlocal2d_forward.2} parent=0 // loop_pre_header
    _
  $region3: #{nonlocal2d_forward.2} parent=0 // loop_header
    %s15 = sphi 0, %s19
    %p16 = scmp.ge.s32.totalorder %s15, 4
    %s25 = sphi 0, %s27
    %s28 = sphi 0, %s25
    %s29 = sphi 0, %s28
    %s45 = sphi 0, %s29
    %s49 = sphi 0, %s49
    %s51 = sphi 0, %s49
    %s52 = sphi 0, %s51
    %s66 = sphi 0, %s52
    %s70 = sphi 0, %s70
    %s72 = sphi 0, %s70
    %s73 = sphi 0, %s72
    %s87 = sphi 0, %s73
    %s91 = sphi 0, %s91
    %s93 = sphi 0, %s91
    %s94 = sphi 0, %s93
    %s108 = sphi 0, %s94
    %s112 = sphi 0, %s112
    %s114 = sphi 0, %s112
    %s115 = sphi 0, %s114
    %s129 = sphi 0, %s115
    %s135 = sphi 0, %s137
    %s138 = sphi 0, %s135
    %s139 = sphi 0, %s138
    %s155 = sphi 0, %s139
    %s161 = sphi 0, %s163
    %s164 = sphi 0, %s161
    %s165 = sphi 0, %s164
    %s181 = sphi 0, %s165
    %s187 = sphi 0, %s189
    %s190 = sphi 0, %s187
    %s191 = sphi 0, %s190
    %s207 = sphi 0, %s191
  $region4: #{nonlocal2d_forward.2} parent=0 // loop_header_branch
    %18 = sbr.rel (%p16) target = $region8
  $region5: #{nonlocal2d_forward.2} parent=0 // loop_body
    %s20 = ssub.s32 %s15, 1
    %s21 = ssub.s32 %s15, 2
    %s22 = sadd.s32 %s15, 1
    %s23 = ssub.s32 %s15, %s22
    %p24 = scmp.eq.s32.totalorder %s23, 0
    %s26 = sadd.s32 %s25, 1
    %s27 = scalar_select %p24, %s25, %s26
    %p30 = pneg %p24
    %p31 = scmp.eq.s32.totalorder %s15, 1
    %p32 = por %p30, %p31
    %p33 = scmp.ne.s32.totalorder %s25, %s28
    %p34 = scmp.eq.s32.totalorder %s15, 0
    %p35 = por %p33, %p34
    %p36 = scmp.ne.s32.totalorder %s25, %s28
    %p37 = scmp.eq.s32.totalorder %s20, 1
    %p38 = por %p36, %p37
    %p39 = scmp.ne.s32.totalorder %s28, %s29
    %p40 = scmp.eq.s32.totalorder %s20, 0
    %p41 = por %p39, %p40
    %p42 = scmp.ne.s32.totalorder %s28, %s29
    %p43 = scmp.eq.s32.totalorder %s21, 1
    %p44 = por %p42, %p43
    %p46 = scmp.ne.s32.totalorder %s29, %s45
    %p47 = scmp.eq.s32.totalorder %s21, 0
    %p48 = por %p46, %p47
    %s50 = sadd.s32 %s49, 1
    %p53 = scmp.eq.s32.totalorder %s15, 1
    %p54 = scmp.ne.s32.totalorder %s49, %s51
    %p55 = scmp.eq.s32.totalorder %s15, 0
    %p56 = por %p54, %p55
    %p57 = scmp.ne.s32.totalorder %s49, %s51
    %p58 = scmp.eq.s32.totalorder %s20, 1
    %p59 = por %p57, %p58
    %p60 = scmp.ne.s32.totalorder %s51, %s52
    %p61 = scmp.eq.s32.totalorder %s20, 0
    %p62 = por %p60, %p61
    %p63 = scmp.ne.s32.totalorder %s51, %s52
    %p64 = scmp.eq.s32.totalorder %s21, 1
    %p65 = por %p63, %p64
    %p67 = scmp.ne.s32.totalorder %s52, %s66
    %p68 = scmp.eq.s32.totalorder %s21, 0
    %p69 = por %p67, %p68
    %s71 = sadd.s32 %s70, 1
    %p74 = scmp.eq.s32.totalorder %s15, 1
    %p75 = scmp.ne.s32.totalorder %s70, %s72
    %p76 = scmp.eq.s32.totalorder %s15, 0
    %p77 = por %p75, %p76
    %p78 = scmp.ne.s32.totalorder %s70, %s72
    %p79 = scmp.eq.s32.totalorder %s20, 1
    %p80 = por %p78, %p79
    %p81 = scmp.ne.s32.totalorder %s72, %s73
    %p82 = scmp.eq.s32.totalorder %s20, 0
    %p83 = por %p81, %p82
    %p84 = scmp.ne.s32.totalorder %s72, %s73
    %p85 = scmp.eq.s32.totalorder %s21, 1
    %p86 = por %p84, %p85
    %p88 = scmp.ne.s32.totalorder %s73, %s87
    %p89 = scmp.eq.s32.totalorder %s21, 0
    %p90 = por %p88, %p89
    %s92 = sadd.s32 %s91, 1
    %p95 = scmp.eq.s32.totalorder %s15, 1
    %p96 = scmp.ne.s32.totalorder %s91, %s93
    %p97 = scmp.eq.s32.totalorder %s15, 0
    %p98 = por %p96, %p97
    %p99 = scmp.ne.s32.totalorder %s91, %s93
    %p100 = scmp.eq.s32.totalorder %s20, 1
    %p101 = por %p99, %p100
    %p102 = scmp.ne.s32.totalorder %s93, %s94
    %p103 = scmp.eq.s32.totalorder %s20, 0
    %p104 = por %p102, %p103
    %p105 = scmp.ne.s32.totalorder %s93, %s94
    %p106 = scmp.eq.s32.totalorder %s21, 1
    %p107 = por %p105, %p106
    %p109 = scmp.ne.s32.totalorder %s94, %s108
    %p110 = scmp.eq.s32.totalorder %s21, 0
    %p111 = por %p109, %p110
    %s113 = sadd.s32 %s112, 1
    %p116 = scmp.eq.s32.totalorder %s15, 1
    %p117 = scmp.ne.s32.totalorder %s112, %s114
    %p118 = scmp.eq.s32.totalorder %s15, 0
    %p119 = por %p117, %p118
    %p120 = scmp.ne.s32.totalorder %s112, %s114
    %p121 = scmp.eq.s32.totalorder %s20, 1
    %p122 = por %p120, %p121
    %p123 = scmp.ne.s32.totalorder %s114, %s115
    %p124 = scmp.eq.s32.totalorder %s20, 0
    %p125 = por %p123, %p124
    %p126 = scmp.ne.s32.totalorder %s114, %s115
    %p127 = scmp.eq.s32.totalorder %s21, 1
    %p128 = por %p126, %p127
    %p130 = scmp.ne.s32.totalorder %s115, %s129
    %p131 = scmp.eq.s32.totalorder %s21, 0
    %p132 = por %p130, %p131
    %s133 = ssub.s32 %s15, %s22
    %p134 = scmp.eq.s32.totalorder %s133, 0
    %s136 = sadd.s32 %s135, 1
    %s137 = scalar_select %p134, %s135, %s136
    %p140 = pneg %p134
    %p141 = scmp.eq.s32.totalorder %s15, 1
    %p142 = por %p140, %p141
    %p143 = scmp.ne.s32.totalorder %s135, %s138
    %p144 = scmp.eq.s32.totalorder %s15, 0
    %p145 = por %p143, %p144
    %p146 = scmp.ne.s32.totalorder %s135, %s138
    %p147 = scmp.eq.s32.totalorder %s20, 1
    %p148 = por %p146, %p147
    %p149 = scmp.ne.s32.totalorder %s138, %s139
    %p150 = scmp.eq.s32.totalorder %s20, 0
    %p151 = por %p149, %p150
    %p152 = scmp.ne.s32.totalorder %s138, %s139
    %p153 = scmp.eq.s32.totalorder %s21, 1
    %p154 = por %p152, %p153
    %p156 = scmp.ne.s32.totalorder %s139, %s155
    %p157 = scmp.eq.s32.totalorder %s21, 0
    %p158 = por %p156, %p157
    %s159 = ssub.s32 %s15, %s22
    %p160 = scmp.eq.s32.totalorder %s159, 0
    %s162 = sadd.s32 %s161, 1
    %s163 = scalar_select %p160, %s161, %s162
    %p166 = pneg %p160
    %p167 = scmp.eq.s32.totalorder %s15, 1
    %p168 = por %p166, %p167
    %p169 = scmp.ne.s32.totalorder %s161, %s164
    %p170 = scmp.eq.s32.totalorder %s15, 0
    %p171 = por %p169, %p170
    %p172 = scmp.ne.s32.totalorder %s161, %s164
    %p173 = scmp.eq.s32.totalorder %s20, 1
    %p174 = por %p172, %p173
    %p175 = scmp.ne.s32.totalorder %s164, %s165
    %p176 = scmp.eq.s32.totalorder %s20, 0
    %p177 = por %p175, %p176
    %p178 = scmp.ne.s32.totalorder %s164, %s165
    %p179 = scmp.eq.s32.totalorder %s21, 1
    %p180 = por %p178, %p179
    %p182 = scmp.ne.s32.totalorder %s165, %s181
    %p183 = scmp.eq.s32.totalorder %s21, 0
    %p184 = por %p182, %p183
    %s185 = ssub.s32 %s15, %s22
    %p186 = scmp.eq.s32.totalorder %s185, 0
    %s188 = sadd.s32 %s187, 1
    %s189 = scalar_select %p186, %s187, %s188
    %p192 = pneg %p186
    %p193 = scmp.eq.s32.totalorder %s15, 1
    %p194 = por %p192, %p193
    %p195 = scmp.ne.s32.totalorder %s187, %s190
    %p196 = scmp.eq.s32.totalorder %s15, 0
    %p197 = por %p195, %p196
    %p198 = scmp.ne.s32.totalorder %s187, %s190
    %p199 = scmp.eq.s32.totalorder %s20, 1
    %p200 = por %p198, %p199
    %p201 = scmp.ne.s32.totalorder %s190, %s191
    %p202 = scmp.eq.s32.totalorder %s20, 0
    %p203 = por %p201, %p202
    %p204 = scmp.ne.s32.totalorder %s190, %s191
    %p205 = scmp.eq.s32.totalorder %s21, 1
    %p206 = por %p204, %p205
    %p208 = scmp.ne.s32.totalorder %s191, %s207
    %p209 = scmp.eq.s32.totalorder %s21, 0
    %p210 = por %p208, %p209
    %p211 = scmp.le.s32.totalorder 1, %s15
    %p212 = scmp.lt.s32.totalorder %s15, 3
    %p213 = pnand %p211, %p212
    %p214 = pneg %p213
    // Predicated region
    $region9: #{nonlocal2d_forward.2} parent=5 // pred_check
      _
    $region10: #{nonlocal2d_forward.2} parent=5 // pred_check_branch
      %216 = sbr.rel (%p213) target = $region12
    $region11: #{nonlocal2d_forward.2} parent=5 // pred_region
      %s217 = ssub.s32 %s15, 1
      // Predicated region
      $region13: #{nonlocal2d_forward.2} parent=11 // pred_check
        %p218 = pneg %p62
      $region14: #{nonlocal2d_forward.2} parent=11 // pred_check_branch
        %220 = sbr.rel (%p218) target = $region16
      $region15: #{nonlocal2d_forward.2} parent=11 // pred_region
        _
      $region16: #{nonlocal2d_forward.2} parent=11 // pred_fallthru
        _
      // Predicated region
      $region17: #{nonlocal2d_forward.2} parent=11 // pred_check
        %p221 = pneg %p83
      $region18: #{nonlocal2d_forward.2} parent=11 // pred_check_branch
        %223 = sbr.rel (%p221) target = $region20
      $region19: #{nonlocal2d_forward.2} parent=11 // pred_region
        _
      $region20: #{nonlocal2d_forward.2} parent=11 // pred_fallthru
        _
      // Predicated region
      $region21: #{nonlocal2d_forward.2} parent=11 // pred_check
        %p224 = pneg %p104
      $region22: #{nonlocal2d_forward.2} parent=11 // pred_check_branch
        %226 = sbr.rel (%p224) target = $region24
      $region23: #{nonlocal2d_forward.2} parent=11 // pred_region
        _
      $region24: #{nonlocal2d_forward.2} parent=11 // pred_fallthru
        _
      // Predicated region
      $region25: #{nonlocal2d_forward.2} parent=11 // pred_check
        %p227 = pneg %p125
      $region26: #{nonlocal2d_forward.2} parent=11 // pred_check_branch
        %229 = sbr.rel (%p227) target = $region28
      $region27: #{nonlocal2d_forward.2} parent=11 // pred_region
        _
      $region28: #{nonlocal2d_forward.2} parent=11 // pred_fallthru
        _
    $region12: #{nonlocal2d_forward.2} parent=5 // pred_fallthru
      _
    %p230 = scmp.lt.s32.totalorder %s15, 2
    // Predicated region
    $region29: #{nonlocal2d_forward.2} parent=5 // pred_check
      %p231 = pneg %p230
    $region30: #{nonlocal2d_forward.2} parent=5 // pred_check_branch
      %233 = sbr.rel (%p231) target = $region32
    $region31: #{nonlocal2d_forward.2} parent=5 // pred_region
      // Predicated region
      $region33: #{nonlocal2d_forward.2} parent=31 // pred_check
        %p234 = pneg %p35
      $region34: #{nonlocal2d_forward.2} parent=31 // pred_check_branch
        %236 = sbr.rel (%p234) target = $region36
      $region35: #{nonlocal2d_forward.2} parent=31 // pred_region
        %p237 = scmp.lt.s32.totalorder %s15, 1
        %s238 = scalar_select %p237, %s15, 1
        %s239 = smul.addr %s238, 2
        %s240 = smul.addr %s239, 4
        %s241 = scalar_lea.vmem %s0, %s240
      $region36: #{nonlocal2d_forward.2} parent=31 // pred_fallthru
        _
    $region32: #{nonlocal2d_forward.2} parent=5 // pred_fallthru
      _
    %p242 = scmp.le.s32.totalorder 1, %s15
    %p243 = scmp.lt.s32.totalorder %s15, 3
    %p244 = pnand %p242, %p243
    %p245 = pneg %p244
    // Predicated region
    $region37: #{nonlocal2d_forward.2} parent=5 // pred_check
      _
    $region38: #{nonlocal2d_forward.2} parent=5 // pred_check_branch
      %247 = sbr.rel (%p244) target = $region40
    $region39: #{nonlocal2d_forward.2} parent=5 // pred_region
      %s248 = ssub.s32 %s15, 1
      %p249 = scmp.lt.s32.totalorder %s20, 1
      %s250 = scalar_select %p249, %s20, 1
      %s251 = smul.addr %s250, 2
      %s252 = smul.addr %s251, 4
      %s253 = scalar_lea.vmem %s0, %s252
      %p254 = pneg %p41
      %p255 = pneg %p38
      %p256 = pneg %p62
      %p257 = pneg %p59
      %p258 = pneg %p83
      %p259 = pneg %p80
      %p260 = pneg %p104
      %p261 = pneg %p101
      %p262 = pneg %p125
      %p263 = pneg %p122
      %p264 = pneg %p151
      %p265 = pneg %p148
      %p266 = scmp.lt.s32.totalorder %s20, 1
      %s267 = scalar_select %p266, %s20, 1
      %s268 = smul.addr %s267, 2
      %s269 = smul.addr %s268, 4
      %s270 = scalar_lea.vmem %s5, %s269
      %p271 = pneg %p177
      %p272 = pneg %p174
      %p273 = scmp.lt.s32.totalorder %s20, 1
      %s274 = scalar_select %p273, %s20, 1
      %s275 = smul.addr %s274, 2
      %s276 = scalar_lea.vmem %s6, %s275
      %p277 = pneg %p203
      %p278 = pneg %p200
      %p279 = scmp.lt.s32.totalorder %s20, 1
      %s280 = scalar_select %p279, %s20, 1
      %s281 = scalar_lea.vmem %s7, %s280
      %p282 = scmp.lt.s32.totalorder %s20, 1
      %s283 = scalar_select %p282, %s20, 1
      %s284 = smul.addr %s283, 2
      %s285 = smul.addr %s284, 4
      %s286 = scalar_lea.vmem %s0, %s285
      %p287 = scmp.lt.s32.totalorder %s20, 1
      %s288 = scalar_select %p287, %s20, 1
      %s289 = smul.addr %s288, 2
      %s290 = smul.addr %s289, 4
      %s291 = scalar_lea.vmem %s5, %s290
      %p292 = scmp.lt.s32.totalorder %s20, 1
      %s293 = scalar_select %p292, %s20, 1
      %s294 = smul.addr %s293, 2
      %s295 = scalar_lea.vmem %s6, %s294
      %p296 = scmp.lt.s32.totalorder %s20, 1
      %s297 = scalar_select %p296, %s20, 1
      %s298 = scalar_lea.vmem %s7, %s297
      %v299 = vld [vmem:[%s286] sm:$0xff]
      %v301 = vcombine.high %v299, %v299
      %303 = vst [vmem:[#allocation2] sm:$0xf] %v299
      %304 = vst [vmem:[#allocation2 + $0x8] sm:$0xf] %v301
      %v305 = vlaneseq
      %vm306 = vcmp.ge.s32.totalorder %v305, 0
      %vm307 = vcmp.lt.s32.totalorder %v305, 256
      %vm308 = vmand %vm306, %vm307
      %s309 = scalar_lea.vmem [#allocation2], 4
      %310 = vst.msk [vmem:[%s309] ss:$8 sm:$0x3] %vm308, 1.0
      %311 = vst.msk [vmem:[%s309] ss:$8 sm:$0x0] %vm308, 1.0
      %v312 = vld [vmem:[%s1] sm:$0x3]
      %v313 = vld [vmem:[#allocation2] sm:$0x1f]
      %v314 = vld [vmem:[#allocation2 + $0x8] sm:$0x1f]
      %vm315 = vcmask 39936
      %v317 = vsel %vm315, %v312, 0
      %vm319 = vcmask 1044480
      %v321 = vsel %vm319, %v313, 0
      %v324 = vsel %vm319, %v314, 0
      %326 = vmatprep.subr.mxu0 %v324
      %327 = vmatpush1.msra.mxu0 %v321
      %328 = vmatprep.subr.mxu0 0.0
      %329 = vmatpush1.msra.mxu0 0.0
      %330 = vmatprep.subr.mxu0 0.0
      %331 = vmatpush1.msra.mxu0 0.0
      %332 = vmatprep.subr.mxu0 0.0
      %333 = vmatpush1.msra.mxu0 0.0
      %334 = vmatprep.subr.mxu0 0.0
      %335 = vmatpush1.msra.mxu0 0.0
      %336 = vmatprep.subr.mxu0 0.0
      %337 = vmatpush1.msra.mxu0 0.0
      %338 = vmatprep.subr.mxu0 0.0
      %339 = vmatpush1.msra.mxu0 0.0
      %340 = vmatprep.subr.mxu0 0.0
      %341 = vmatpush1.msra.mxu0 0.0
      %342 = vmatprep.subr.mxu0 0.0
      %343 = vmatpush1.msra.mxu0 0.0
      %344 = vmatprep.subr.mxu0 0.0
      %345 = vmatpush1.msra.mxu0 0.0
      %346 = vmatprep.subr.mxu0 0.0
      %347 = vmatpush1.msra.mxu0 0.0
      %348 = vmatprep.subr.mxu0 0.0
      %349 = vmatpush1.msra.mxu0 0.0
      %350 = vmatprep.subr.mxu0 0.0
      %351 = vmatpush1.msra.mxu0 0.0
      %352 = vmatprep.subr.mxu0 0.0
      %353 = vmatpush1.msra.mxu0 0.0
      %354 = vmatprep.subr.mxu0 0.0
      %355 = vmatpush1.msra.mxu0 0.0
      %356 = vmatprep.subr.mxu0 0.0
      %357 = vmatpush1.msra.mxu0 0.0
      %358 = vmatprep.subr.mxu0 0.0
      %359 = vmatpush1.msra.mxu0 0.0
      %360 = vmatprep.subr.mxu0 0.0
      %361 = vmatpush1.msra.mxu0 0.0
      %362 = vmatprep.subr.mxu0 0.0
      %363 = vmatpush1.msra.mxu0 0.0
      %364 = vmatprep.subr.mxu0 0.0
      %365 = vmatpush1.msra.mxu0 0.0
      %366 = vmatprep.subr.mxu0 0.0
      %367 = vmatpush1.msra.mxu0 0.0
      %368 = vmatprep.subr.mxu0 0.0
      %369 = vmatpush1.msra.mxu0 0.0
      %370 = vmatprep.subr.mxu0 0.0
      %371 = vmatpush1.msra.mxu0 0.0
      %372 = vmatprep.subr.mxu0 0.0
      %373 = vmatpush1.msra.mxu0 0.0
      %374 = vmatprep.subr.mxu0 0.0
      %375 = vmatpush1.msra.mxu0 0.0
      %376 = vmatprep.subr.mxu0 0.0
      %377 = vmatpush1.msra.mxu0 0.0
      %378 = vmatprep.subr.mxu0 0.0
      %379 = vmatpush1.msra.mxu0 0.0
      %380 = vmatprep.subr.mxu0 0.0
      %381 = vmatpush1.msra.mxu0 0.0
      %382 = vmatprep.subr.mxu0 0.0
      %383 = vmatpush1.msra.mxu0 0.0
      %384 = vmatprep.subr.mxu0 0.0
      %385 = vmatpush1.msra.mxu0 0.0
      %386 = vmatprep.subr.mxu0 0.0
      %387 = vmatpush1.msra.mxu0 0.0
      %388 = vmatprep.subr.mxu0 0.0
      %389 = vmatpush1.msra.mxu0 0.0
      %390 = vmatprep.mubr.f32.mxu0 0.0
      %391 = vmatmul.mubr.f32.gmra.mrb[0].mxu0 %v317
      %v392 = vpop.f32.mrb[0].mxu0
      %v393 = vadd.f32 0.0, %v392
      %v394 = vpop.f32.mrb[0].mxu0
      %v395 = vadd.f32 0.0, %v394
      %396 = vdwg.mxu0
      %v397 = vmul.f32 %v393, %v393
      %v398 = vmul.f32 %v395, %v395
      %vm399 = vcmask 1041408
      %v400 = vsel %vm399, %v397, 0.0
      %v401 = vrot.slane %v400, 4
      %v402 = vadd.f32 %v400, %v401
      %v403 = vrot.slane %v402, 2
      %v404 = vadd.f32 %v402, %v403
      %v405 = vrot.slane %v404, 1
      %v406 = vadd.f32 %v404, %v405
      %v407 = vsel %vm399, %v398, 0.0
      %v408 = vrot.slane %v407, 4
      %v409 = vadd.f32 %v407, %v408
      %v410 = vrot.slane %v409, 2
      %v411 = vadd.f32 %v409, %v410
      %v412 = vrot.slane %v411, 1
      %v413 = vadd.f32 %v411, %v412
      %v414 = vadd.f32 %v406, 1e-24
      %v415 = vadd.f32 %v413, 1e-24
      %v416 = vrsqrt.pop %v414
      %v417 = vrsqrt.pop %v415
      %v418 = vmul.f32 %v416, 3.1622777
      %v419 = vmul.f32 %v417, 3.1622777
      %v420 = vmul.f32 %v393, %v418
      %v421 = vmul.f32 %v395, %v419
      %v424 = vcombine.low %v420, %v421
      %v426 = vunpack.c.l.s4 1983009808
      %v427 = vunpack.c.0.s8 %v426
      %v428 = vlaneseq
      %v429 = vshrl.u32 %v428, 7
      %v430 = vsub.s32 %v427, %v429
      %v431 = vrot.slane %v424, %v430
      %433 = vst [vmem:[#allocation3] sm:$0xf] %v431
      %v434 = vld [vmem:[#allocation3] sm:$0xf]
      %v435 = vld [vmem:[#allocation3] sm:$0xf]
      %v436 = vld [vmem:[#allocation2] sm:$0x1f]
      %v437 = vld [vmem:[#allocation2 + $0x8] sm:$0x1f]
      %v440 = vunpack.c.l.s4 1983009808
      %v441 = vunpack.c.0.s8 %v440
      %v442 = vlaneseq
      %v443 = vshrl.u32 %v442, 7
      %v444 = vsub.s32 %v441, %v443
      %v445 = vrot.slane %v434, %v444
      %v446 = vcombine.high %v445, %v445
      %449 = vxpose.xlu0.b32.start [1/16] %v445, 128
      %450 = vxpose.xlu0.b32.cont [2/16] 0.0, 128
      %451 = vxpose.xlu0.b32.cont [3/16] 0.0, 128
      %452 = vxpose.xlu0.b32.cont [4/16] 0.0, 128
      %453 = vxpose.xlu0.b32.cont [5/16] 0.0, 128
      %454 = vxpose.xlu0.b32.cont [6/16] 0.0, 128
      %455 = vxpose.xlu0.b32.cont [7/16] 0.0, 128
      %456 = vxpose.xlu0.b32.cont [8/16] 0.0, 128
      %457 = vxpose.xlu0.b32.cont [9/16] 0.0, 128
      %458 = vxpose.xlu0.b32.cont [10/16] 0.0, 128
      %459 = vxpose.xlu0.b32.cont [11/16] 0.0, 128
      %460 = vxpose.xlu0.b32.cont [12/16] 0.0, 128
      %461 = vxpose.xlu0.b32.cont [13/16] 0.0, 128
      %462 = vxpose.xlu0.b32.cont [14/16] 0.0, 128
      %463 = vxpose.xlu0.b32.cont [15/16] 0.0, 128
      %464 = vxpose.xlu0.b32.end [16/16] 0.0, 128
      %v465 = vpop.trf.xlu0
      %v466 = vpop.trf.xlu0
      %v467 = vpop.trf.xlu0
      %v468 = vpop.trf.xlu0
      %v469 = vpop.trf.xlu0
      %v470 = vpop.trf.xlu0
      %v471 = vpop.trf.xlu0
      %v472 = vpop.trf.xlu0
      %v473 = vpop.trf.xlu0
      %v474 = vpop.trf.xlu0
      %v475 = vpop.trf.xlu0
      %v476 = vpop.trf.xlu0
      %v477 = vpop.trf.xlu0
      %v478 = vpop.trf.xlu0
      %v479 = vpop.trf.xlu0
      %v480 = vpop.trf.xlu0
      %481 = vxpose.xlu0.b32.start [1/16] %v446, 128
      %482 = vxpose.xlu0.b32.cont [2/16] 0.0, 128
      %483 = vxpose.xlu0.b32.cont [3/16] 0.0, 128
      %484 = vxpose.xlu0.b32.cont [4/16] 0.0, 128
      %485 = vxpose.xlu0.b32.cont [5/16] 0.0, 128
      %486 = vxpose.xlu0.b32.cont [6/16] 0.0, 128
      %487 = vxpose.xlu0.b32.cont [7/16] 0.0, 128
      %488 = vxpose.xlu0.b32.cont [8/16] 0.0, 128
      %489 = vxpose.xlu0.b32.cont [9/16] 0.0, 128
      %490 = vxpose.xlu0.b32.cont [10/16] 0.0, 128
      %491 = vxpose.xlu0.b32.cont [11/16] 0.0, 128
      %492 = vxpose.xlu0.b32.cont [12/16] 0.0, 128
      %493 = vxpose.xlu0.b32.cont [13/16] 0.0, 128
      %494 = vxpose.xlu0.b32.cont [14/16] 0.0, 128
      %495 = vxpose.xlu0.b32.cont [15/16] 0.0, 128
      %496 = vxpose.xlu0.b32.end [16/16] 0.0, 128
      %v497 = vpop.trf.xlu0
      %v498 = vpop.trf.xlu0
      %v499 = vpop.trf.xlu0
      %v500 = vpop.trf.xlu0
      %v501 = vpop.trf.xlu0
      %v502 = vpop.trf.xlu0
      %v503 = vpop.trf.xlu0
      %v504 = vpop.trf.xlu0
      %v505 = vpop.trf.xlu0
      %v506 = vpop.trf.xlu0
      %v507 = vpop.trf.xlu0
      %v508 = vpop.trf.xlu0
      %v509 = vpop.trf.xlu0
      %v510 = vpop.trf.xlu0
      %v511 = vpop.trf.xlu0
      %v512 = vpop.trf.xlu0
      %v515 = vunpack.c.l.s4 1983009808
      %v516 = vunpack.c.0.s8 %v515
      %v517 = vlaneseq
      %v518 = vshrl.u32 %v517, 7
      %v519 = vsub.s32 %v516, %v518
      %v520 = vrot.slane %v435, %v519
      %v521 = vcombine.high %v520, %v520
      %vm522 = vcmask 15360
      %v524 = vsel %vm522, %v465, 0
      %v527 = vsel %vm522, %v466, 0
      %v530 = vsel %vm522, %v467, 0
      %v533 = vsel %vm522, %v468, 0
      %v536 = vsel %vm522, %v469, 0
      %v539 = vsel %vm522, %v470, 0
      %v542 = vsel %vm522, %v471, 0
      %v545 = vsel %vm522, %v472, 0
      %v548 = vsel %vm522, %v473, 0
      %v551 = vsel %vm522, %v474, 0
      %v554 = vsel %vm522, %v475, 0
      %v557 = vsel %vm522, %v476, 0
      %v560 = vsel %vm522, %v477, 0
      %v563 = vsel %vm522, %v478, 0
      %v566 = vsel %vm522, %v479, 0
      %v569 = vsel %vm522, %v480, 0
      %v572 = vsel %vm522, %v497, 0
      %v575 = vsel %vm522, %v498, 0
      %v578 = vsel %vm522, %v499, 0
      %v581 = vsel %vm522, %v500, 0
      %v584 = vsel %vm522, %v501, 0
      %v587 = vsel %vm522, %v502, 0
      %v590 = vsel %vm522, %v503, 0
      %v593 = vsel %vm522, %v504, 0
      %v596 = vsel %vm522, %v505, 0
      %v599 = vsel %vm522, %v506, 0
      %v602 = vsel %vm522, %v507, 0
      %v605 = vsel %vm522, %v508, 0
      %v608 = vsel %vm522, %v509, 0
      %v611 = vsel %vm522, %v510, 0
      %v614 = vsel %vm522, %v511, 0
      %v617 = vsel %vm522, %v512, 0
      %v619 = vsel %vm399, %v520, 0
      %v621 = vsel %vm399, %v521, 0
      %623 = vmatprep.subr.mxu0 %v621
      %624 = vmatpush1.msra.mxu0 %v619
      %625 = vmatprep.subr.mxu0 0.0
      %626 = vmatpush1.msra.mxu0 0.0
      %627 = vmatprep.subr.mxu0 0.0
      %628 = vmatpush1.msra.mxu0 0.0
      %629 = vmatprep.subr.mxu0 0.0
      %630 = vmatpush1.msra.mxu0 0.0
      %631 = vmatprep.subr.mxu0 0.0
      %632 = vmatpush1.msra.mxu0 0.0
      %633 = vmatprep.subr.mxu0 0.0
      %634 = vmatpush1.msra.mxu0 0.0
      %635 = vmatprep.subr.mxu0 0.0
      %636 = vmatpush1.msra.mxu0 0.0
      %637 = vmatprep.subr.mxu0 0.0
      %638 = vmatpush1.msra.mxu0 0.0
      %639 = vmatprep.subr.mxu0 0.0
      %640 = vmatpush1.msra.mxu0 0.0
      %641 = vmatprep.subr.mxu0 0.0
      %642 = vmatpush1.msra.mxu0 0.0
      %643 = vmatprep.subr.mxu0 0.0
      %644 = vmatpush1.msra.mxu0 0.0
      %645 = vmatprep.subr.mxu0 0.0
      %646 = vmatpush1.msra.mxu0 0.0
      %647 = vmatprep.subr.mxu0 0.0
      %648 = vmatpush1.msra.mxu0 0.0
      %649 = vmatprep.subr.mxu0 0.0
      %650 = vmatpush1.msra.mxu0 0.0
      %651 = vmatprep.subr.mxu0 0.0
      %652 = vmatpush1.msra.mxu0 0.0
      %653 = vmatprep.subr.mxu0 0.0
      %654 = vmatpush1.msra.mxu0 0.0
      %655 = vmatprep.subr.mxu0 0.0
      %656 = vmatpush1.msra.mxu0 0.0
      %657 = vmatprep.subr.mxu0 0.0
      %658 = vmatpush1.msra.mxu0 0.0
      %659 = vmatprep.subr.mxu0 0.0
      %660 = vmatpush1.msra.mxu0 0.0
      %661 = vmatprep.subr.mxu0 0.0
      %662 = vmatpush1.msra.mxu0 0.0
      %663 = vmatprep.subr.mxu0 0.0
      %664 = vmatpush1.msra.mxu0 0.0
      %665 = vmatprep.subr.mxu0 0.0
      %666 = vmatpush1.msra.mxu0 0.0
      %667 = vmatprep.subr.mxu0 0.0
      %668 = vmatpush1.msra.mxu0 0.0
      %669 = vmatprep.subr.mxu0 0.0
      %670 = vmatpush1.msra.mxu0 0.0
      %671 = vmatprep.subr.mxu0 0.0
      %672 = vmatpush1.msra.mxu0 0.0
      %673 = vmatprep.subr.mxu0 0.0
      %674 = vmatpush1.msra.mxu0 0.0
      %675 = vmatprep.subr.mxu0 0.0
      %676 = vmatpush1.msra.mxu0 0.0
      %677 = vmatprep.subr.mxu0 0.0
      %678 = vmatpush1.msra.mxu0 0.0
      %679 = vmatprep.subr.mxu0 0.0
      %680 = vmatpush1.msra.mxu0 0.0
      %681 = vmatprep.subr.mxu0 0.0
      %682 = vmatpush1.msra.mxu0 0.0
      %683 = vmatprep.subr.mxu0 0.0
      %684 = vmatpush1.msra.mxu0 0.0
      %685 = vmatprep.subr.mxu0 0.0
      %686 = vmatpush1.msra.mxu0 0.0
      %687 = vmatprep.mubr.f32.mxu0 0.0
      %688 = vmatmul.mubr.f32.gmra.mrb[0].mxu0 %v524
      %v689 = vpop.f32.mrb[0].mxu0
      %v690 = vadd.f32 0.0, %v689
      %v691 = vpop.f32.mrb[0].mxu0
      %v692 = vadd.f32 0.0, %v691
      %693 = vmatprep.mubr.f32.mxu0 0.0
      %694 = vmatmul.mubr.f32.gmra.mrb[0].mxu0 %v527
      %v695 = vpop.f32.mrb[0].mxu0
      %v696 = vadd.f32 0.0, %v695
      %v697 = vpop.f32.mrb[0].mxu0
      %v698 = vadd.f32 0.0, %v697
      %699 = vmatprep.mubr.f32.mxu0 0.0
      %700 = vmatmul.mubr.f32.gmra.mrb[0].mxu0 %v530
      %v701 = vpop.f32.mrb[0].mxu0
      %v702 = vadd.f32 0.0, %v701
      %v703 = vpop.f32.mrb[0].mxu0
      %v704 = vadd.f32 0.0, %v703
      %705 = vmatprep.mubr.f32.mxu0 0.0
      %706 = vmatmul.mubr.f32.gmra.mrb[0].mxu0 %v533
      %v707 = vpop.f32.mrb[0].mxu0
      %v708 = vadd.f32 0.0, %v707
      %v709 = vpop.f32.mrb[0].mxu0
      %v710 = vadd.f32 0.0, %v709
      %711 = vmatprep.mubr.f32.mxu0 0.0
      %712 = vmatmul.mubr.f32.gmra.mrb[0].mxu0 %v536
      %v713 = vpop.f32.mrb[0].mxu0
      %v714 = vadd.f32 0.0, %v713
      %v715 = vpop.f32.mrb[0].mxu0
      %v716 = vadd.f32 0.0, %v715
      %717 = vmatprep.mubr.f32.mxu0 0.0
      %718 = vmatmul.mubr.f32.gmra.mrb[0].mxu0 %v539
      %v719 = vpop.f32.mrb[0].mxu0
      %v720 = vadd.f32 0.0, %v719
      %v721 = vpop.f32.mrb[0].mxu0
      %v722 = vadd.f32 0.0, %v721
      %723 = vmatprep.mubr.f32.mxu0 0.0
      %724 = vmatmul.mubr.f32.gmra.mrb[0].mxu0 %v542
      %v725 = vpop.f32.mrb[0].mxu0
      %v726 = vadd.f32 0.0, %v725
      %v727 = vpop.f32.mrb[0].mxu0
      %v728 = vadd.f32 0.0, %v727
      %729 = vmatprep.mubr.f32.mxu0 0.0
      %730 = vmatmul.mubr.f32.gmra.mrb[0].mxu0 %v545
      %v731 = vpop.f32.mrb[0].mxu0
      %v732 = vadd.f32 0.0, %v731
      %v733 = vpop.f32.mrb[0].mxu0
      %v734 = vadd.f32 0.0, %v733
      %735 = vmatprep.mubr.f32.mxu0 0.0
      %736 = vmatmul.mubr.f32.gmra.mrb[0].mxu0 %v548
      %v737 = vpop.f32.mrb[0].mxu0
      %v738 = vadd.f32 0.0, %v737
      %v739 = vpop.f32.mrb[0].mxu0
      %v740 = vadd.f32 0.0, %v739
      %741 = vmatprep.mubr.f32.mxu0 0.0
      %742 = vmatmul.mubr.f32.gmra.mrb[0].mxu0 %v551
      %v743 = vpop.f32.mrb[0].mxu0
      %v744 = vadd.f32 0.0, %v743
      %v745 = vpop.f32.mrb[0].mxu0
      %v746 = vadd.f32 0.0, %v745
      %747 = vmatprep.mubr.f32.mxu0 0.0
      %748 = vmatmul.mubr.f32.gmra.mrb[0].mxu0 %v554
      %v749 = vpop.f32.mrb[0].mxu0
      %v750 = vadd.f32 0.0, %v749
      %v751 = vpop.f32.mrb[0].mxu0
      %v752 = vadd.f32 0.0, %v751
      %753 = vmatprep.mubr.f32.mxu0 0.0
      %754 = vmatmul.mubr.f32.gmra.mrb[0].mxu0 %v557
      %v755 = vpop.f32.mrb[0].mxu0
      %v756 = vadd.f32 0.0, %v755
      %v757 = vpop.f32.mrb[0].mxu0
      %v758 = vadd.f32 0.0, %v757
      %759 = vmatprep.mubr.f32.mxu0 0.0
      %760 = vmatmul.mubr.f32.gmra.mrb[0].mxu0 %v560
      %v761 = vpop.f32.mrb[0].mxu0
      %v762 = vadd.f32 0.0, %v761
      %v763 = vpop.f32.mrb[0].mxu0
      %v764 = vadd.f32 0.0, %v763
      %765 = vmatprep.mubr.f32.mxu0 0.0
      %766 = vmatmul.mubr.f32.gmra.mrb[0].mxu0 %v563
      %v767 = vpop.f32.mrb[0].mxu0
      %v768 = vadd.f32 0.0, %v767
      %v769 = vpop.f32.mrb[0].mxu0
      %v770 = vadd.f32 0.0, %v769
      %771 = vmatprep.mubr.f32.mxu0 0.0
      %772 = vmatmul.mubr.f32.gmra.mrb[0].mxu0 %v566
      %v773 = vpop.f32.mrb[0].mxu0
      %v774 = vadd.f32 0.0, %v773
      %v775 = vpop.f32.mrb[0].mxu0
      %v776 = vadd.f32 0.0, %v775
      %777 = vmatprep.mubr.f32.mxu0 0.0
      %778 = vmatmul.mubr.f32.gmra.mrb[0].mxu0 %v569
      %v779 = vpop.f32.mrb[0].mxu0
      %v780 = vadd.f32 0.0, %v779
      %v781 = vpop.f32.mrb[0].mxu0
      %v782 = vadd.f32 0.0, %v781
      %783 = vmatprep.mubr.f32.mxu0 0.0
      %784 = vmatmul.mubr.f32.gmra.mrb[0].mxu0 %v572
      %v785 = vpop.f32.mrb[0].mxu0
      %v786 = vadd.f32 0.0, %v785
      %v787 = vpop.f32.mrb[0].mxu0
      %v788 = vadd.f32 0.0, %v787
      %789 = vmatprep.mubr.f32.mxu0 0.0
      %790 = vmatmul.mubr.f32.gmra.mrb[0].mxu0 %v575
      %v791 = vpop.f32.mrb[0].mxu0
      %v792 = vadd.f32 0.0, %v791
      %v793 = vpop.f32.mrb[0].mxu0
      %v794 = vadd.f32 0.0, %v793
      %795 = vmatprep.mubr.f32.mxu0 0.0
      %796 = vmatmul.mubr.f32.gmra.mrb[0].mxu0 %v578
      %v797 = vpop.f32.mrb[0].mxu0
      %v798 = vadd.f32 0.0, %v797
      %v799 = vpop.f32.mrb[0].mxu0
      %v800 = vadd.f32 0.0, %v799
      %801 = vmatprep.mubr.f32.mxu0 0.0
      %802 = vmatmul.mubr.f32.gmra.mrb[0].mxu0 %v581
      %v803 = vpop.f32.mrb[0].mxu0
      %v804 = vadd.f32 0.0, %v803
      %v805 = vpop.f32.mrb[0].mxu0
      %v806 = vadd.f32 0.0, %v805
      %807 = vmatprep.mubr.f32.mxu0 0.0
      %808 = vmatmul.mubr.f32.gmra.mrb[0].mxu0 %v584
      %v809 = vpop.f32.mrb[0].mxu0
      %v810 = vadd.f32 0.0, %v809
      %v811 = vpop.f32.mrb[0].mxu0
      %v812 = vadd.f32 0.0, %v811
      %813 = vmatprep.mubr.f32.mxu0 0.0
      %814 = vmatmul.mubr.f32.gmra.mrb[0].mxu0 %v587
      %v815 = vpop.f32.mrb[0].mxu0
      %v816 = vadd.f32 0.0, %v815
      %v817 = vpop.f32.mrb[0].mxu0
      %v818 = vadd.f32 0.0, %v817
      %819 = vmatprep.mubr.f32.mxu0 0.0
      %820 = vmatmul.mubr.f32.gmra.mrb[0].mxu0 %v590
      %v821 = vpop.f32.mrb[0].mxu0
      %v822 = vadd.f32 0.0, %v821
      %v823 = vpop.f32.mrb[0].mxu0
      %v824 = vadd.f32 0.0, %v823
      %825 = vmatprep.mubr.f32.mxu0 0.0
      %826 = vmatmul.mubr.f32.gmra.mrb[0].mxu0 %v593
      %v827 = vpop.f32.mrb[0].mxu0
      %v828 = vadd.f32 0.0, %v827
      %v829 = vpop.f32.mrb[0].mxu0
      %v830 = vadd.f32 0.0, %v829
      %831 = vmatprep.mubr.f32.mxu0 0.0
      %832 = vmatmul.mubr.f32.gmra.mrb[0].mxu0 %v596
      %v833 = vpop.f32.mrb[0].mxu0
      %v834 = vadd.f32 0.0, %v833
      %v835 = vpop.f32.mrb[0].mxu0
      %v836 = vadd.f32 0.0, %v835
      %837 = vmatprep.mubr.f32.mxu0 0.0
      %838 = vmatmul.mubr.f32.gmra.mrb[0].mxu0 %v599
      %v839 = vpop.f32.mrb[0].mxu0
      %v840 = vadd.f32 0.0, %v839
      %v841 = vpop.f32.mrb[0].mxu0
      %v842 = vadd.f32 0.0, %v841
      %843 = vmatprep.mubr.f32.mxu0 0.0
      %844 = vmatmul.mubr.f32.gmra.mrb[0].mxu0 %v602
      %v845 = vpop.f32.mrb[0].mxu0
      %v846 = vadd.f32 0.0, %v845
      %v847 = vpop.f32.mrb[0].mxu0
      %v848 = vadd.f32 0.0, %v847
      %849 = vmatprep.mubr.f32.mxu0 0.0
      %850 = vmatmul.mubr.f32.gmra.mrb[0].mxu0 %v605
      %v851 = vpop.f32.mrb[0].mxu0
      %v852 = vadd.f32 0.0, %v851
      %v853 = vpop.f32.mrb[0].mxu0
      %v854 = vadd.f32 0.0, %v853
      %855 = vmatprep.mubr.f32.mxu0 0.0
      %856 = vmatmul.mubr.f32.gmra.mrb[0].mxu0 %v608
      %v857 = vpop.f32.mrb[0].mxu0
      %v858 = vadd.f32 0.0, %v857
      %v859 = vpop.f32.mrb[0].mxu0
      %v860 = vadd.f32 0.0, %v859
      %861 = vmatprep.mubr.f32.mxu0 0.0
      %862 = vmatmul.mubr.f32.gmra.mrb[0].mxu0 %v611
      %v863 = vpop.f32.mrb[0].mxu0
      %v864 = vadd.f32 0.0, %v863
      %v865 = vpop.f32.mrb[0].mxu0
      %v866 = vadd.f32 0.0, %v865
      %867 = vmatprep.mubr.f32.mxu0 0.0
      %868 = vmatmul.mubr.f32.gmra.mrb[0].mxu0 %v614
      %v869 = vpop.f32.mrb[0].mxu0
      %v870 = vadd.f32 0.0, %v869
      %v871 = vpop.f32.mrb[0].mxu0
      %v872 = vadd.f32 0.0, %v871
      %873 = vmatprep.mubr.f32.mxu0 0.0
      %874 = vmatmul.mubr.f32.gmra.mrb[0].mxu0 %v617
      %v875 = vpop.f32.mrb[0].mxu0
      %v876 = vadd.f32 0.0, %v875
      %v877 = vpop.f32.mrb[0].mxu0
      %v878 = vadd.f32 0.0, %v877
      %879 = vdwg.mxu0
      %v880 = vmul.f32 %v690, 1.442695
      %v881 = vpow.pop %v880
      %v882 = vmul.f32 %v692, 1.442695
      %v883 = vpow.pop %v882
      %v884 = vmul.f32 %v696, 1.442695
      %v885 = vpow.pop %v884
      %v886 = vmul.f32 %v698, 1.442695
      %v887 = vpow.pop %v886
      %v888 = vmul.f32 %v702, 1.442695
      %v889 = vpow.pop %v888
      %v890 = vmul.f32 %v704, 1.442695
      %v891 = vpow.pop %v890
      %v892 = vmul.f32 %v708, 1.442695
      %v893 = vpow.pop %v892
      %v894 = vmul.f32 %v710, 1.442695
      %v895 = vpow.pop %v894
      %v896 = vmul.f32 %v714, 1.442695
      %v897 = vpow.pop %v896
      %v898 = vmul.f32 %v716, 1.442695
      %v899 = vpow.pop %v898
      %v900 = vmul.f32 %v720, 1.442695
      %v901 = vpow.pop %v900
      %v902 = vmul.f32 %v722, 1.442695
      %v903 = vpow.pop %v902
      %v904 = vmul.f32 %v726, 1.442695
      %v905 = vpow.pop %v904
      %v906 = vmul.f32 %v728, 1.442695
      %v907 = vpow.pop %v906
      %v908 = vmul.f32 %v732, 1.442695
      %v909 = vpow.pop %v908
      %v910 = vmul.f32 %v734, 1.442695
      %v911 = vpow.pop %v910
      %v912 = vmul.f32 %v738, 1.442695
      %v913 = vpow.pop %v912
      %v914 = vmul.f32 %v740, 1.442695
      %v915 = vpow.pop %v914
      %v916 = vmul.f32 %v744, 1.442695
      %v917 = vpow.pop %v916
      %v918 = vmul.f32 %v746, 1.442695
      %v919 = vpow.pop %v918
      %v920 = vmul.f32 %v750, 1.442695
      %v921 = vpow.pop %v920
      %v922 = vmul.f32 %v752, 1.442695
      %v923 = vpow.pop %v922
      %v924 = vmul.f32 %v756, 1.442695
      %v925 = vpow.pop %v924
      %v926 = vmul.f32 %v758, 1.442695
      %v927 = vpow.pop %v926
      %v928 = vmul.f32 %v762, 1.442695
      %v929 = vpow.pop %v928
      %v930 = vmul.f32 %v764, 1.442695
      %v931 = vpow.pop %v930
      %v932 = vmul.f32 %v768, 1.442695
      %v933 = vpow.pop %v932
      %v934 = vmul.f32 %v770, 1.442695
      %v935 = vpow.pop %v934
      %v936 = vmul.f32 %v774, 1.442695
      %v937 = vpow.pop %v936
      %v938 = vmul.f32 %v776, 1.442695
      %v939 = vpow.pop %v938
      %v940 = vmul.f32 %v780, 1.442695
      %v941 = vpow.pop %v940
      %v942 = vmul.f32 %v782, 1.442695
      %v943 = vpow.pop %v942
      %v944 = vmul.f32 %v786, 1.442695
      %v945 = vpow.pop %v944
      %v946 = vmul.f32 %v788, 1.442695
      %v947 = vpow.pop %v946
      %v948 = vmul.f32 %v792, 1.442695
      %v949 = vpow.pop %v948
      %v950 = vmul.f32 %v794, 1.442695
      %v951 = vpow.pop %v950
      %v952 = vmul.f32 %v798, 1.442695
      %v953 = vpow.pop %v952
      %v954 = vmul.f32 %v800, 1.442695
      %v955 = vpow.pop %v954
      %v956 = vmul.f32 %v804, 1.442695
      %v957 = vpow.pop %v956
      %v958 = vmul.f32 %v806, 1.442695
      %v959 = vpow.pop %v958
      %v960 = vmul.f32 %v810, 1.442695
      %v961 = vpow.pop %v960
      %v962 = vmul.f32 %v812, 1.442695
      %v963 = vpow.pop %v962
      %v964 = vmul.f32 %v816, 1.442695
      %v965 = vpow.pop %v964
      %v966 = vmul.f32 %v818, 1.442695
      %v967 = vpow.pop %v966
      %v968 = vmul.f32 %v822, 1.442695
      %v969 = vpow.pop %v968
      %v970 = vmul.f32 %v824, 1.442695
      %v971 = vpow.pop %v970
      %v972 = vmul.f32 %v828, 1.442695
      %v973 = vpow.pop %v972
      %v974 = vmul.f32 %v830, 1.442695
      %v975 = vpow.pop %v974
      %v976 = vmul.f32 %v834, 1.442695
      %v977 = vpow.pop %v976
      %v978 = vmul.f32 %v836, 1.442695
      %v979 = vpow.pop %v978
      %v980 = vmul.f32 %v840, 1.442695
      %v981 = vpow.pop %v980
      %v982 = vmul.f32 %v842, 1.442695
      %v983 = vpow.pop %v982
      %v984 = vmul.f32 %v846, 1.442695
      %v985 = vpow.pop %v984
      %v986 = vmul.f32 %v848, 1.442695
      %v987 = vpow.pop %v986
      %v988 = vmul.f32 %v852, 1.442695
      %v989 = vpow.pop %v988
      %v990 = vmul.f32 %v854, 1.442695
      %v991 = vpow.pop %v990
      %v992 = vmul.f32 %v858, 1.442695
      %v993 = vpow.pop %v992
      %v994 = vmul.f32 %v860, 1.442695
      %v995 = vpow.pop %v994
      %v996 = vmul.f32 %v864, 1.442695
      %v997 = vpow.pop %v996
      %v998 = vmul.f32 %v866, 1.442695
      %v999 = vpow.pop %v998
      %v1000 = vmul.f32 %v870, 1.442695
      %v1001 = vpow.pop %v1000
      %v1002 = vmul.f32 %v872, 1.442695
      %v1003 = vpow.pop %v1002
      %v1004 = vmul.f32 %v876, 1.442695
      %v1005 = vpow.pop %v1004
      %v1006 = vmul.f32 %v878, 1.442695
      %v1007 = vpow.pop %v1006
      %1008 = vmatprep.subr.mxu0 %v883
      %1009 = vmatpush1.xpose.msra.mxu0 %v881
      %1010 = vmatprep.subr.mxu0 %v887
      %1011 = vmatpush1.xpose.msra.mxu0 %v885
      %1012 = vmatprep.subr.mxu0 %v891
      %1013 = vmatpush1.xpose.msra.mxu0 %v889
      %1014 = vmatprep.subr.mxu0 %v895
      %1015 = vmatpush1.xpose.msra.mxu0 %v893
      %1016 = vmatprep.subr.mxu0 %v899
      %1017 = vmatpush1.xpose.msra.mxu0 %v897
      %1018 = vmatprep.subr.mxu0 %v903
      %1019 = vmatpush1.xpose.msra.mxu0 %v901
      %1020 = vmatprep.subr.mxu0 %v907
      %1021 = vmatpush1.xpose.msra.mxu0 %v905
      %1022 = vmatprep.subr.mxu0 %v911
      %1023 = vmatpush1.xpose.msra.mxu0 %v909
      %1024 = vmatprep.subr.mxu0 %v915
      %1025 = vmatpush1.xpose.msra.mxu0 %v913
      %1026 = vmatprep.subr.mxu0 %v919
      %1027 = vmatpush1.xpose.msra.mxu0 %v917
      %1028 = vmatprep.subr.mxu0 %v923
      %1029 = vmatpush1.xpose.msra.mxu0 %v921
      %1030 = vmatprep.subr.mxu0 %v927
      %1031 = vmatpush1.xpose.msra.mxu0 %v925
      %1032 = vmatprep.subr.mxu0 %v931
      %1033 = vmatpush1.xpose.msra.mxu0 %v929
      %1034 = vmatprep.subr.mxu0 %v935
      %1035 = vmatpush1.xpose.msra.mxu0 %v933
      %1036 = vmatprep.subr.mxu0 %v939
      %1037 = vmatpush1.xpose.msra.mxu0 %v937
      %1038 = vmatprep.subr.mxu0 %v943
      %1039 = vmatpush1.xpose.msra.mxu0 %v941
      %1040 = vmatprep.subr.mxu0 %v947
      %1041 = vmatpush1.xpose.msra.mxu0 %v945
      %1042 = vmatprep.subr.mxu0 %v951
      %1043 = vmatpush1.xpose.msra.mxu0 %v949
      %1044 = vmatprep.subr.mxu0 %v955
      %1045 = vmatpush1.xpose.msra.mxu0 %v953
      %1046 = vmatprep.subr.mxu0 %v959
      %1047 = vmatpush1.xpose.msra.mxu0 %v957
      %1048 = vmatprep.subr.mxu0 %v963
      %1049 = vmatpush1.xpose.msra.mxu0 %v961
      %1050 = vmatprep.subr.mxu0 %v967
      %1051 = vmatpush1.xpose.msra.mxu0 %v965
      %1052 = vmatprep.subr.mxu0 %v971
      %1053 = vmatpush1.xpose.msra.mxu0 %v969
      %1054 = vmatprep.subr.mxu0 %v975
      %1055 = vmatpush1.xpose.msra.mxu0 %v973
      %1056 = vmatprep.subr.mxu0 %v979
      %1057 = vmatpush1.xpose.msra.mxu0 %v977
      %1058 = vmatprep.subr.mxu0 %v983
      %1059 = vmatpush1.xpose.msra.mxu0 %v981
      %1060 = vmatprep.subr.mxu0 %v987
      %1061 = vmatpush1.xpose.msra.mxu0 %v985
      %1062 = vmatprep.subr.mxu0 %v991
      %1063 = vmatpush1.xpose.msra.mxu0 %v989
      %1064 = vmatprep.subr.mxu0 %v995
      %1065 = vmatpush1.xpose.msra.mxu0 %v993
      %1066 = vmatprep.subr.mxu0 %v999
      %1067 = vmatpush1.xpose.msra.mxu0 %v997
      %1068 = vmatprep.subr.mxu0 %v1003
      %1069 = vmatpush1.xpose.msra.mxu0 %v1001
      %1070 = vmatprep.subr.mxu0 %v1007
      %1071 = vmatpush1.xpose.msra.mxu0 %v1005
      %1072 = vmatprep.mubr.f32.mxu0 %v437
      %1073 = vmatmul.mubr.f32.gmra.mrb[0].mxu0 %v436
      %v1074 = vpop.f32.mrb[0].mxu0
      %v1075 = vadd.f32 0.0, %v1074
      %v1076 = vpop.f32.mrb[0].mxu0
      %v1077 = vadd.f32 0.0, %v1076
      %1078 = vdwg.mxu0
      %v1079 = vrcp.pop %v1075
      %v1080 = vrcp.pop %v1077
      %v1081 = vmul.f32 %v1075, %v1079
      %v1082 = vmul.f32 %v1077, %v1080
      %v1083 = vsub.f32 2.0, %v1081
      %v1084 = vsub.f32 2.0, %v1082
      %v1085 = vmul.f32 %v1079, %v1083
      %v1086 = vmul.f32 %v1080, %v1084
      %v1087 = vlaneseq
      %v1088 = vshrl.u32 %v1087, 7
      %v1089 = vsub.s32 4, %v1088
      %v1090 = vrot.slane %v1085, %v1089
      %v1091 = vlaneseq
      %v1092 = vshrl.u32 %v1091, 7
      %v1093 = vsub.s32 4, %v1092
      %v1094 = vrot.slane %v1086, %v1093
      %v1095 = vmul.f32 %v1075, %v1090
      %v1096 = vmul.f32 %v1077, %v1094
      %v1099 = vcombine.low %v1095, %v1096
      %1101 = vst [vmem:[%s291] sm:$0xff] %v1099
      %v1102 = vld [vmem:[%s2] sm:$0xff]
      %v1103 = vld [vmem:[%s2 + $0x8] sm:$0xff]
      %v1105 = vsel %vm315, %v1102, 0
      %v1108 = vsel %vm315, %v1103, 0
      %v1110 = vsel %vm319, %v1095, 0
      %v1112 = vsel %vm319, %v1096, 0
      %1114 = vmatprep.subr.mxu0 %v1112
      %1115 = vmatpush1.msra.mxu0 %v1110
      %1116 = vmatprep.subr.mxu0 0.0
      %1117 = vmatpush1.msra.mxu0 0.0
      %1118 = vmatprep.subr.mxu0 0.0
      %1119 = vmatpush1.msra.mxu0 0.0
      %1120 = vmatprep.subr.mxu0 0.0
      %1121 = vmatpush1.msra.mxu0 0.0
      %1122 = vmatprep.subr.mxu0 0.0
      %1123 = vmatpush1.msra.mxu0 0.0
      %1124 = vmatprep.subr.mxu0 0.0
      %1125 = vmatpush1.msra.mxu0 0.0
      %1126 = vmatprep.subr.mxu0 0.0
      %1127 = vmatpush1.msra.mxu0 0.0
      %1128 = vmatprep.subr.mxu0 0.0
      %1129 = vmatpush1.msra.mxu0 0.0
      %1130 = vmatprep.subr.mxu0 0.0
      %1131 = vmatpush1.msra.mxu0 0.0
      %1132 = vmatprep.subr.mxu0 0.0
      %1133 = vmatpush1.msra.mxu0 0.0
      %1134 = vmatprep.subr.mxu0 0.0
      %1135 = vmatpush1.msra.mxu0 0.0
      %1136 = vmatprep.subr.mxu0 0.0
      %1137 = vmatpush1.msra.mxu0 0.0
      %1138 = vmatprep.subr.mxu0 0.0
      %1139 = vmatpush1.msra.mxu0 0.0
      %1140 = vmatprep.subr.mxu0 0.0
      %1141 = vmatpush1.msra.mxu0 0.0
      %1142 = vmatprep.subr.mxu0 0.0
      %1143 = vmatpush1.msra.mxu0 0.0
      %1144 = vmatprep.subr.mxu0 0.0
      %1145 = vmatpush1.msra.mxu0 0.0
      %1146 = vmatprep.subr.mxu0 0.0
      %1147 = vmatpush1.msra.mxu0 0.0
      %1148 = vmatprep.subr.mxu0 0.0
      %1149 = vmatpush1.msra.mxu0 0.0
      %1150 = vmatprep.subr.mxu0 0.0
      %1151 = vmatpush1.msra.mxu0 0.0
      %1152 = vmatprep.subr.mxu0 0.0
      %1153 = vmatpush1.msra.mxu0 0.0
      %1154 = vmatprep.subr.mxu0 0.0
      %1155 = vmatpush1.msra.mxu0 0.0
      %1156 = vmatprep.subr.mxu0 0.0
      %1157 = vmatpush1.msra.mxu0 0.0
      %1158 = vmatprep.subr.mxu0 0.0
      %1159 = vmatpush1.msra.mxu0 0.0
      %1160 = vmatprep.subr.mxu0 0.0
      %1161 = vmatpush1.msra.mxu0 0.0
      %1162 = vmatprep.subr.mxu0 0.0
      %1163 = vmatpush1.msra.mxu0 0.0
      %1164 = vmatprep.subr.mxu0 0.0
      %1165 = vmatpush1.msra.mxu0 0.0
      %1166 = vmatprep.subr.mxu0 0.0
      %1167 = vmatpush1.msra.mxu0 0.0
      %1168 = vmatprep.subr.mxu0 0.0
      %1169 = vmatpush1.msra.mxu0 0.0
      %1170 = vmatprep.subr.mxu0 0.0
      %1171 = vmatpush1.msra.mxu0 0.0
      %1172 = vmatprep.subr.mxu0 0.0
      %1173 = vmatpush1.msra.mxu0 0.0
      %1174 = vmatprep.subr.mxu0 0.0
      %1175 = vmatpush1.msra.mxu0 0.0
      %1176 = vmatprep.subr.mxu0 0.0
      %1177 = vmatpush1.msra.mxu0 0.0
      %1178 = vmatprep.mubr.f32.mxu0 0.0
      %1179 = vmatmul.mubr.f32.gmra.mrb[0].mxu0 %v1105
      %v1180 = vpop.f32.mrb[0].mxu0
      %v1181 = vadd.f32 0.0, %v1180
      %v1182 = vpop.f32.mrb[0].mxu0
      %v1183 = vadd.f32 0.0, %v1182
      %1184 = vmatprep.mubr.f32.mxu0 0.0
      %1185 = vmatmul.mubr.f32.gmra.mrb[0].mxu0 %v1108
      %v1186 = vpop.f32.mrb[0].mxu0
      %v1187 = vadd.f32 0.0, %v1186
      %v1188 = vpop.f32.mrb[0].mxu0
      %v1189 = vadd.f32 0.0, %v1188
      %1190 = vdwg.mxu0
      %v1191 = vmax.f32 %v1181, 0.0
      %v1192 = vmax.f32 %v1183, 0.0
      %v1193 = vmax.f32 %v1187, 0.0
      %v1194 = vmax.f32 %v1189, 0.0
      %v1195 = vld [vmem:[%s3] sm:$0x1]
      %s1196 = sld [smem:[#allocation4]]
      %v1197 = vstv %s1196
      %vm1198 = vcmask 130048
      %v1200 = vsel %vm1198, %v1195, 0
      %1202 = vmatprep.subr.mxu0 %v1192
      %1203 = vmatpush1.msra.mxu0 %v1191
      %1204 = vmatprep.subr.mxu0 %v1194
      %1205 = vmatpush1.msra.mxu0 %v1193
      %1206 = vmatprep.subr.mxu0 0.0
      %1207 = vmatpush1.msra.mxu0 0.0
      %1208 = vmatprep.subr.mxu0 0.0
      %1209 = vmatpush1.msra.mxu0 0.0
      %1210 = vmatprep.subr.mxu0 0.0
      %1211 = vmatpush1.msra.mxu0 0.0
      %1212 = vmatprep.subr.mxu0 0.0
      %1213 = vmatpush1.msra.mxu0 0.0
      %1214 = vmatprep.subr.mxu0 0.0
      %1215 = vmatpush1.msra.mxu0 0.0
      %1216 = vmatprep.subr.mxu0 0.0
      %1217 = vmatpush1.msra.mxu0 0.0
      %1218 = vmatprep.subr.mxu0 0.0
      %1219 = vmatpush1.msra.mxu0 0.0
      %1220 = vmatprep.subr.mxu0 0.0
      %1221 = vmatpush1.msra.mxu0 0.0
      %1222 = vmatprep.subr.mxu0 0.0
      %1223 = vmatpush1.msra.mxu0 0.0
      %1224 = vmatprep.subr.mxu0 0.0
      %1225 = vmatpush1.msra.mxu0 0.0
      %1226 = vmatprep.subr.mxu0 0.0
      %1227 = vmatpush1.msra.mxu0 0.0
      %1228 = vmatprep.subr.mxu0 0.0
      %1229 = vmatpush1.msra.mxu0 0.0
      %1230 = vmatprep.subr.mxu0 0.0
      %1231 = vmatpush1.msra.mxu0 0.0
      %1232 = vmatprep.subr.mxu0 0.0
      %1233 = vmatpush1.msra.mxu0 0.0
      %1234 = vmatprep.subr.mxu0 0.0
      %1235 = vmatpush1.msra.mxu0 0.0
      %1236 = vmatprep.subr.mxu0 0.0
      %1237 = vmatpush1.msra.mxu0 0.0
      %1238 = vmatprep.subr.mxu0 0.0
      %1239 = vmatpush1.msra.mxu0 0.0
      %1240 = vmatprep.subr.mxu0 0.0
      %1241 = vmatpush1.msra.mxu0 0.0
      %1242 = vmatprep.subr.mxu0 0.0
      %1243 = vmatpush1.msra.mxu0 0.0
      %1244 = vmatprep.subr.mxu0 0.0
      %1245 = vmatpush1.msra.mxu0 0.0
      %1246 = vmatprep.subr.mxu0 0.0
      %1247 = vmatpush1.msra.mxu0 0.0
      %1248 = vmatprep.subr.mxu0 0.0
      %1249 = vmatpush1.msra.mxu0 0.0
      %1250 = vmatprep.subr.mxu0 0.0
      %1251 = vmatpush1.msra.mxu0 0.0
      %1252 = vmatprep.subr.mxu0 0.0
      %1253 = vmatpush1.msra.mxu0 0.0
      %1254 = vmatprep.subr.mxu0 0.0
      %1255 = vmatpush1.msra.mxu0 0.0
      %1256 = vmatprep.subr.mxu0 0.0
      %1257 = vmatpush1.msra.mxu0 0.0
      %1258 = vmatprep.subr.mxu0 0.0
      %1259 = vmatpush1.msra.mxu0 0.0
      %1260 = vmatprep.subr.mxu0 0.0
      %1261 = vmatpush1.msra.mxu0 0.0
      %1262 = vmatprep.subr.mxu0 0.0
      %1263 = vmatpush1.msra.mxu0 0.0
      %1264 = vmatprep.subr.mxu0 0.0
      %1265 = vmatpush1.msra.mxu0 0.0
      %1266 = vmatprep.mubr.f32.mxu0 0.0
      %1267 = vmatmul.mubr.f32.gmra.mrb[0].mxu0 %v1200
      %v1268 = vpop.f32.mrb[0].mxu0
      %v1269 = vadd.f32 %v1197, %v1268
      %v1270 = vpop.f32.mrb[0].mxu0
      %v1271 = vadd.f32 %v1197, %v1270
      %1272 = vdwg.mxu0
      %v1275 = vcombine.low %v1269, %v1271
      %v1277 = vunpack.c.l.s4 1966171168
      %v1278 = vunpack.c.0.s8 %v1277
      %v1279 = vlaneseq
      %v1280 = vshrl.u32 %v1279, 7
      %v1281 = vsub.s32 %v1278, %v1280
      %v1282 = vrot.slane %v1275, %v1281
      %v1284 = vunpack.c.l.s4 1966171168
      %v1285 = vunpack.c.0.s8 %v1284
      %v1286 = vlaneseq
      %v1287 = vshrl.u32 %v1286, 7
      %v1288 = vsub.s32 %v1285, %v1287
      %v1289 = vrot.slane %v1282, %v1288
      %1291 = vst.msk [vmem:[%s295] sm:$0x3] %vm308, %v1289
      %vm1292 = vcmask 1040384
      %v1293 = vsel %vm1292, %v1269, 0.0
      %v1294 = vsel %vm1292, %v1271, 0.0
      %v1295 = vadd.f32 %v1293, %v1294
      %1296 = vadd.xlane.f32.xlu0 %v1295
      %v1297 = vpop.xlane.xlu0 %1296
      %vm1298 = vcmask 0
      %1299 = vst.msk [vmem:[%s298] sm:$0x1] %vm1298, %v1297
      %v1300 = vmul.f32 %v1269, %v1269
      %v1301 = vmul.f32 %v1271, %v1271
      %v1302 = vsel %vm1292, %v1300, 0.0
      %v1303 = vsel %vm1292, %v1301, 0.0
      %v1304 = vadd.f32 %v1302, %v1303
      %1305 = vadd.xlane.f32.xlu0 %v1304
      %v1306 = vpop.xlane.xlu0 %1305
      %vm1307 = vcmask 8200
      %1308 = vst.msk [vmem:[%s298] sm:$0x1] %vm1307, %v1306
      %p1309 = scmp.lt.s32.totalorder %s20, 1
      %s1310 = scalar_select %p1309, %s20, 1
      %s1311 = smul.addr %s1310, 2
      %s1312 = smul.addr %s1311, 4
      %s1313 = scalar_lea.vmem %s5, %s1312
      %p1314 = scmp.lt.s32.totalorder %s20, 1
      %s1315 = scalar_select %p1314, %s20, 1
      %s1316 = smul.addr %s1315, 2
      %s1317 = scalar_lea.vmem %s6, %s1316
      %p1318 = scmp.lt.s32.totalorder %s20, 1
      %s1319 = scalar_select %p1318, %s20, 1
      %s1320 = scalar_lea.vmem %s7, %s1319
      // Predicated region
      $region41: #{nonlocal2d_forward.2} parent=39 // pred_check
        %p1321 = pneg %p148
      $region42: #{nonlocal2d_forward.2} parent=39 // pred_check_branch
        %1323 = sbr.rel (%p1321) target = $region44
      $region43: #{nonlocal2d_forward.2} parent=39 // pred_region
        _
      $region44: #{nonlocal2d_forward.2} parent=39 // pred_fallthru
        _
      // Predicated region
      $region45: #{nonlocal2d_forward.2} parent=39 // pred_check
        %p1324 = pneg %p174
      $region46: #{nonlocal2d_forward.2} parent=39 // pred_check_branch
        %1326 = sbr.rel (%p1324) target = $region48
      $region47: #{nonlocal2d_forward.2} parent=39 // pred_region
        _
      $region48: #{nonlocal2d_forward.2} parent=39 // pred_fallthru
        _
      // Predicated region
      $region49: #{nonlocal2d_forward.2} parent=39 // pred_check
        %p1327 = pneg %p200
      $region50: #{nonlocal2d_forward.2} parent=39 // pred_check_branch
        %1329 = sbr.rel (%p1327) target = $region52
      $region51: #{nonlocal2d_forward.2} parent=39 // pred_region
        _
      $region52: #{nonlocal2d_forward.2} parent=39 // pred_fallthru
        _
    $region40: #{nonlocal2d_forward.2} parent=5 // pred_fallthru
      _
    %p1330 = scmp.le.s32.totalorder 2, %s15
    // Predicated region
    $region53: #{nonlocal2d_forward.2} parent=5 // pred_check
      %p1331 = pneg %p1330
    $region54: #{nonlocal2d_forward.2} parent=5 // pred_check_branch
      %1333 = sbr.rel (%p1331) target = $region56
    $region55: #{nonlocal2d_forward.2} parent=5 // pred_region
      %s1334 = ssub.s32 %s15, 2
      // Predicated region
      $region57: #{nonlocal2d_forward.2} parent=55 // pred_check
        %p1335 = pneg %p154
      $region58: #{nonlocal2d_forward.2} parent=55 // pred_check_branch
        %1337 = sbr.rel (%p1335) target = $region60
      $region59: #{nonlocal2d_forward.2} parent=55 // pred_region
        %p1338 = scmp.lt.s32.totalorder %s21, 1
        %s1339 = scalar_select %p1338, %s21, 1
        %s1340 = smul.addr %s1339, 2
        %s1341 = smul.addr %s1340, 4
        %s1342 = scalar_lea.vmem %s5, %s1341
      $region60: #{nonlocal2d_forward.2} parent=55 // pred_fallthru
        _
      // Predicated region
      $region61: #{nonlocal2d_forward.2} parent=55 // pred_check
        %p1343 = pneg %p180
      $region62: #{nonlocal2d_forward.2} parent=55 // pred_check_branch
        %1345 = sbr.rel (%p1343) target = $region64
      $region63: #{nonlocal2d_forward.2} parent=55 // pred_region
        %p1346 = scmp.lt.s32.totalorder %s21, 1
        %s1347 = scalar_select %p1346, %s21, 1
        %s1348 = smul.addr %s1347, 2
        %s1349 = scalar_lea.vmem %s6, %s1348
      $region64: #{nonlocal2d_forward.2} parent=55 // pred_fallthru
        _
      // Predicated region
      $region65: #{nonlocal2d_forward.2} parent=55 // pred_check
        %p1350 = pneg %p206
      $region66: #{nonlocal2d_forward.2} parent=55 // pred_check_branch
        %1352 = sbr.rel (%p1350) target = $region68
      $region67: #{nonlocal2d_forward.2} parent=55 // pred_region
        %p1353 = scmp.lt.s32.totalorder %s21, 1
        %s1354 = scalar_select %p1353, %s21, 1
        %s1355 = scalar_lea.vmem %s7, %s1354
      $region68: #{nonlocal2d_forward.2} parent=55 // pred_fallthru
        _
    $region56: #{nonlocal2d_forward.2} parent=5 // pred_fallthru
      _
  $region6: #{nonlocal2d_forward.2} parent=0 // loop_footer
    %s19 = sadd.s32 1, %s15
  $region7: #{nonlocal2d_forward.2} parent=0 // loop_footer_branch
    %14 = sbr.rel target = $region3
  $region8: #{nonlocal2d_forward.2} parent=0 // loop_exit
    _

</llo_original>
